<compile_context>
chip_gen: v7x
topology: tpu7x:2x2x1
jax: 0.10.0
libtpu: 0.0.40
codegen_flags: <defaults>
</compile_context>

<pallas_src>
import math

import jax
import jax.numpy as jnp
from jax.experimental import pallas as pl
from jax.experimental.pallas import tpu as pltpu


# ----------------------------------------------------------------------------
# small helpers
# ----------------------------------------------------------------------------
_LOG2 = math.log(2.0)


def _ssp(x):
    """Shifted softplus: softplus(x) - log(2) (stable, exp/log only -> EUP)."""
    return jnp.maximum(x, 0.0) + jnp.log(1.0 + jnp.exp(-jnp.abs(x))) - _LOG2


def _int_pow(u, n):
    """u**n for static positive int n via square-and-multiply (VALU muls only)."""
    result = None
    base = u
    while True:
        if n & 1:
            result = base if result is None else result * base
        n >>= 1
        if n == 0:
            return result
        base = base * base


def _zero_index_map(nd):
    return lambda i: (0,) * nd


def _full_spec(shape):
    return pl.BlockSpec(shape, _zero_index_map(len(shape)))


# ----------------------------------------------------------------------------
# fused forward kernel (transposed, lane-dense layout)
# ----------------------------------------------------------------------------
def make_fused_kernel(*, Z, F, L, cutoff, power):
    prefac = math.sqrt(2.0 / cutoff)
    s3 = math.sqrt(3.0)
    inv_cut = 1.0 / cutoff
    p = float(power)
    c1 = (p + 1.0) * (p + 2.0) / 2.0
    c2 = p * (p + 2.0)
    c3 = p * (p + 1.0) / 2.0
    ipow = int(power)
    bf16 = jnp.bfloat16
    f32 = jnp.float32

    def kernel(oh_ref, diff_ref, sin_ref, send_ref, recv_ref,
               wchem_ref, w1bd_ref, wr1_ref, wr2_ref, w2fg_ref, w2v_ref,
               wscfg_ref, wscv_ref, wro_ref,
               energy_ref):

        def mxu(a, b):
            # bf16 MXU operands, f32 accumulation (v6e/v7x full-rate, exact for 0/1 one-hots)
            return jnp.dot(a.astype(bf16), b.astype(bf16), preferred_element_type=f32)

        # ------------------------------------------------------------------
        # edge embedding: Bessel basis * polynomial cutoff + real SH (lmax=1)
        # layout: everything is [rows, E] with E on lanes
        # ------------------------------------------------------------------
        d = diff_ref[...]                                        # [3, E]
        dx = d[0:1, :]
        dy = d[1:2, :]
        dz = d[2:3, :]
        r = jnp.sqrt(dx * dx + dy * dy + dz * dz)                # [1, E]
        inv_r = 1.0 / jnp.maximum(r, 1e-12)                      # exact reciprocal
        bessel = prefac * sin_ref[...] * inv_r                   # [B, E]
        u = r * inv_cut
        up = _int_pow(u, ipow)                                   # u**power (square&multiply)
        up1 = up * u
        up2 = up1 * u
        env = 1.0 - c1 * up + c2 * up1 - c3 * up2
        env = jnp.where(u < 1.0, env, 0.0)
        rad = bessel * env                                       # [B, E]
        yx = (s3 * dx) * inv_r                                   # [1, E]
        yy = (s3 * dy) * inv_r
        yz = (s3 * dz) * inv_r

        oh = oh_ref[...].astype(f32)                             # [Z, N]
        send = send_ref[...]                                     # [N, E]  (bf16, sender one-hot^T)
        recv = recv_ref[...]                                     # [E, N]  (bf16, receiver one-hot)

        # ------------------------------------------------------------------
        # chemical embedding: AtomwiseLinear(one-hot -> F x 0e); 1e block = 0
        # ------------------------------------------------------------------
        x_s = mxu(wchem_ref[...], oh)                            # [F, N]
        zeros = jnp.zeros_like(x_s)
        x_vx, x_vy, x_vz = zeros, zeros, zeros

        # ------------------------------------------------------------------
        # interaction layers (statically unrolled; features stay in vregs)
        # ------------------------------------------------------------------
        for l in range(L):
            # self-connection FullyConnectedTensorProduct(node_feat, species one-hot):
            # species-masked [ZF, N] expansion built in registers (no VMEM scratch)
            def expand(x):
                return jnp.concatenate([oh[z:z + 1, :] * x for z in range(Z)], axis=0)

            sc_fg = mxu(wscfg_ref[l], expand(x_s))               # [2F, N] (feat | gate)
            wscv_l = wscv_ref[l]
            sc_vx = mxu(wscv_l, expand(x_vx))                    # [F, N]
            sc_vy = mxu(wscv_l, expand(x_vy))
            sc_vz = mxu(wscv_l, expand(x_vz))

            # linear_1 (block-diagonal irreps-wise mixing) + sender gather, packed
            xcat = jnp.concatenate([x_s, x_vx, x_vy, x_vz], axis=0)   # [4F, N] in vregs
            h = mxu(w1bd_ref[l], xcat)                                # [4F, N]
            e = mxu(h, send)                                          # [4F, E] gather
            e_s  = e[0 * F:1 * F, :]
            e_vx = e[1 * F:2 * F, :]
            e_vy = e[2 * F:3 * F, :]
            e_vz = e[3 * F:4 * F, :]

            # radial MLP -> all 5 TP path weights in one lane-dense matmul
            # (CG factors and 1/sqrt(avg_num_neighbors) folded into wr2 at init)
            hrad = _ssp(mxu(wr1_ref[l], rad))                         # [H, E]
            wp = mxu(wr2_ref[l], hrad)                                # [5F, E]
            wp0 = wp[0 * F:1 * F, :]
            wp1 = wp[1 * F:2 * F, :]
            wp2 = wp[2 * F:3 * F, :]
            wp3 = wp[3 * F:4 * F, :]
            wp4 = wp[4 * F:5 * F, :]

            # weighted tensor product (uvu) -> packed [11F, E] message slab in vregs
            t1 = wp1 * e_s
            m = jnp.concatenate([
                wp0 * e_s,                                            # 0e.0e->0e
                wp3 * (e_vx * yx + e_vy * yy + e_vz * yz),            # 1e.1e->0e
                t1 * yx,                                              # 0e.1e->1e x
                wp2 * e_vx,                                           # 1e.0e->1e x
                wp4 * (e_vy * yz - e_vz * yy),                        # 1e.1e->1e x
                t1 * yy,                                              # y ...
                wp2 * e_vy,
                wp4 * (e_vz * yx - e_vx * yz),
                t1 * yz,                                              # z ...
                wp2 * e_vz,
                wp4 * (e_vx * yy - e_vy * yx),
            ], axis=0)                                                # [11F, E]

            # scatter-sum to receiver nodes: all 11 TP paths in ONE matmul
            a = mxu(m, recv)                                          # [11F, N]

            # linear_2 (mix TP paths) + self-connection skip + Gate nonlinearity
            fg = mxu(w2fg_ref[l], a[0:2 * F, :]) + sc_fg              # [2F, N]
            w2v_l = w2v_ref[l]
            vx = mxu(w2v_l, a[2 * F:5 * F, :]) + sc_vx
            vy = mxu(w2v_l, a[5 * F:8 * F, :]) + sc_vy
            vz = mxu(w2v_l, a[8 * F:11 * F, :]) + sc_vz
            g = _ssp(fg[F:2 * F, :])
            x_s = _ssp(fg[0:F, :])
            x_vx = vx * g
            x_vy = vy * g
            x_vz = vz * g

        # ------------------------------------------------------------------
        # readout: both e3nn Linears folded into one [1, F] weight (no
        # intermediate nonlinearity); lane-dense [1, N] output row
        # ------------------------------------------------------------------
        energy_ref[...] = mxu(wro_ref[...], x_s)                      # [1, N]

    return kernel


# ----------------------------------------------------------------------------
# JAX wrapper: one fused pallas_call
# ----------------------------------------------------------------------------
def nequip_forward(params, onehot, edge_diff, send_t, recv, *,
                   cutoff, power, num_basis, num_interactions, num_features):
    Z, N = onehot.shape
    E = edge_diff.shape[1]
    F = num_features
    L = num_interactions

    # TODO(synk): the Bessel sine numerator is the single op computed outside the
    # fused kernel (Mosaic transcendental sine support is not relied upon).
    # Self-edges (r == 0) are assumed excluded from the edge list.
    r = jnp.sqrt(jnp.sum(edge_diff ** 2, axis=0, keepdims=True))         # [1, E]
    freqs = (jnp.arange(1, num_basis + 1, dtype=jnp.float32) * jnp.pi)[:, None]
    sin_nr = jnp.sin(freqs * (r / cutoff))                               # [B, E]

    kernel = make_fused_kernel(Z=Z, F=F, L=L, cutoff=cutoff, power=power)
    bf = lambda a: a.astype(jnp.bfloat16)
    inputs = [bf(onehot), edge_diff, sin_nr, bf(send_t), bf(recv),
              bf(params["w_chem"]), bf(params["w1bd"]), bf(params["wr1"]),
              bf(params["wr2"]), bf(params["w2fg"]), bf(params["w2v"]),
              bf(params["wscfg"]), bf(params["wscv"]), bf(params["w_ro"])]

    energy = pl.pallas_call(
        kernel,
        grid=(1,),
        in_specs=[_full_spec(a.shape) for a in inputs],
        out_specs=_full_spec((1, N)),
        out_shape=jax.ShapeDtypeStruct((1, N), jnp.float32),
        compiler_params=pltpu.CompilerParams(dimension_semantics=("arbitrary",)),
    )(*inputs)

    # TODO(synk): at scale, replace the one-hot gather/scatter with scalar-prefetched
    # edge indices + segment-sum, stream edges through a "parallel" grid axis (v7x
    # megacore) with tiles sized for 64 MiB VMEM, and raise pipeline depth on v6e.
    return energy[0]


# ----------------------------------------------------------------------------
# deterministic synthetic parameter init (constants pre-folded / pre-packed,
# weights in "left-multiply" [out, in] orientation for the transposed layout)
# ----------------------------------------------------------------------------
def init_params(key, *, Z, F, B, H, L, avg_num_neighbors):
    keys = iter(jax.random.split(key, 4 + 12 * L))

    def nrm(shape, fan_in):
        return jax.random.normal(next(keys), shape, jnp.float32) / math.sqrt(fan_in)

    inv_sqrt3 = 1.0 / math.sqrt(3.0)   # CG: 1e x 1e -> 0e (dot)
    inv_sqrt2 = 1.0 / math.sqrt(2.0)   # CG: 1e x 1e -> 1e (cross)
    msg_scale = 1.0 / math.sqrt(avg_num_neighbors)
    # TODO(synk): exact e3nn path/activation normalization constants are not
    # reproduced (weights are synthetic anyway); operation structure is.

    params = {"w_chem": nrm((F, Z), Z)}
    w1bd_l, wr1_l, wr2_l, w2fg_l, w2v_l, wscfg_l, wscv_l = ([] for _ in range(7))
    for _ in range(L):
        # linear_1: block-diagonal over irreps (w_s on 0e, shared w_v on 1e x/y/z)
        w1_s = nrm((F, F), F)
        w1_v = nrm((F, F), F)
        bd = jnp.zeros((4 * F, 4 * F), jnp.float32)
        bd = bd.at[0:F, 0:F].set(w1_s)
        for c in range(1, 4):
            bd = bd.at[c * F:(c + 1) * F, c * F:(c + 1) * F].set(w1_v)
        w1bd_l.append(bd)

        # radial MLP; fold CG factors + 1/sqrt(avg_num_neighbors) into path weights
        wr1_l.append(nrm((H, B), B))
        wr2 = nrm((5, F, H), H)        # paths: 0e0e, 0e1e, 1e0e, 1e1e->0e, 1e1e->1e
        scales = (msg_scale, msg_scale, msg_scale,
                  msg_scale * inv_sqrt3, msg_scale * inv_sqrt2)
        wr2_l.append(jnp.concatenate([wr2[i] * scales[i] for i in range(5)], axis=0))  # [5F, H]

        # linear_2: feat+gate stacked on output rows, the two 0e TP paths on columns;
        # one shared vector weight over the 3 stacked 1e TP paths
        wf = nrm((2, F, F), 2 * F)
        wg = nrm((2, F, F), 2 * F)
        wv = nrm((3, F, F), 3 * F)
        w2fg_l.append(jnp.concatenate(
            [jnp.concatenate([wf[0], wf[1]], axis=1),
             jnp.concatenate([wg[0], wg[1]], axis=1)], axis=0))                # [2F, 2F]
        w2v_l.append(jnp.concatenate([wv[0], wv[1], wv[2]], axis=1))           # [F, 3F]

        # self-connection: per-species weights stacked along input columns
        wsc_f = nrm((Z, F, F), Z * F)
        wsc_g = nrm((Z, F, F), Z * F)
        wsc_v = nrm((Z, F, F), Z * F)
        wscfg_l.append(jnp.concatenate(
            [jnp.concatenate([wsc_f[z] for z in range(Z)], axis=1),
             jnp.concatenate([wsc_g[z] for z in range(Z)], axis=1)], axis=0))  # [2F, ZF]
        wscv_l.append(jnp.concatenate([wsc_v[z] for z in range(Z)], axis=1))   # [F, ZF]

    params["w1bd"] = jnp.stack(w1bd_l)
    params["wr1"] = jnp.stack(wr1_l)
    params["wr2"] = jnp.stack(wr2_l)
    params["w2fg"] = jnp.stack(w2fg_l)
    params["w2v"] = jnp.stack(w2v_l)
    params["wscfg"] = jnp.stack(wscfg_l)
    params["wscv"] = jnp.stack(wscv_l)

    # readout MLP folded: Linear(F -> F//2) @ Linear(F//2 -> 1) == one [1, F] weight
    F2 = max(1, F // 2)
    w_ro1 = nrm((F, F2), F)
    w_ro2 = nrm((F2, 1), F2)
    params["w_ro"] = (w_ro1 @ w_ro2).T                                         # [1, F]
    return params


# ----------------------------------------------------------------------------
# main
# ----------------------------------------------------------------------------
if __name__ == "__main__":
    key = jax.random.PRNGKey(0)

    # model config (valid NequipModel constructor args)
    cutoff = 5.0
    num_interactions = 2
    species = ["H", "C", "N", "O"]
    Z = len(species)
    F = 8      # num_features
    B = 8      # num_basis
    H = 16     # radial-MLP hidden width
    power = 6

    # small synthetic graph
    N, E = 16, 64
    k_pos, k_z, k_p = jax.random.split(key, 3)
    pos = jax.random.uniform(k_pos, (N, 3), jnp.float32, 0.0, 3.0)
    atom_types = jax.random.randint(k_z, (N,), 0, Z)
    onehot = jax.nn.one_hot(atom_types, Z, dtype=jnp.float32).T              # [Z, N]

    senders = jnp.arange(E, dtype=jnp.int32) % N
    receivers = (jnp.arange(E, dtype=jnp.int32) * 5 + 3) % N
    receivers = jnp.where(receivers == senders, (receivers + 1) % N, receivers)
    edge_diff = (pos[receivers] - pos[senders]).T                            # [3, E]
    send_t = jax.nn.one_hot(senders, N, dtype=jnp.float32).T                 # [N, E]
    recv = jax.nn.one_hot(receivers, N, dtype=jnp.float32)                   # [E, N]
    avg_num_neighbors = float(E) / float(N)

    params = init_params(k_p, Z=Z, F=F, B=B, H=H, L=num_interactions,
                         avg_num_neighbors=avg_num_neighbors)

    atomic_energy = nequip_forward(
        params, onehot, edge_diff, send_t, recv,
        cutoff=cutoff, power=power, num_basis=B,
        num_interactions=num_interactions, num_features=F)
    atomic_energy = jax.block_until_ready(atomic_energy)

    assert atomic_energy.shape == (N,)
    assert bool(jnp.all(jnp.isfinite(atomic_energy)))
    print("KERNEL_OK")
</pallas_src>

<mosaic_0001>
module attributes {stable_mosaic.version = 11 : i64} {
  func.func @kernel(%arg0: i32, %arg1: memref<4x16xbf16, #tpu.memory_space<vmem>>, %arg2: memref<3x64xf32, #tpu.memory_space<vmem>>, %arg3: memref<8x64xf32, #tpu.memory_space<vmem>>, %arg4: memref<16x64xbf16, #tpu.memory_space<vmem>>, %arg5: memref<64x16xbf16, #tpu.memory_space<vmem>>, %arg6: memref<8x4xbf16, #tpu.memory_space<vmem>>, %arg7: memref<2x32x32xbf16, #tpu.memory_space<vmem>>, %arg8: memref<2x16x8xbf16, #tpu.memory_space<vmem>>, %arg9: memref<2x40x16xbf16, #tpu.memory_space<vmem>>, %arg10: memref<2x16x16xbf16, #tpu.memory_space<vmem>>, %arg11: memref<2x8x24xbf16, #tpu.memory_space<vmem>>, %arg12: memref<2x16x32xbf16, #tpu.memory_space<vmem>>, %arg13: memref<2x8x32xbf16, #tpu.memory_space<vmem>>, %arg14: memref<1x8xbf16, #tpu.memory_space<vmem>>, %arg15: memref<1x16xf32, #tpu.memory_space<vmem>>) attributes {dimension_semantics = [#tpu.dimension_semantics<arbitrary>], iteration_bounds = array<i64: 1>, scalar_prefetch = 0 : i64, scratch_operands = 0 : i64, tpu.core_type = #tpu.core_type<tc>, window_params = [{pipeline_mode = #tpu.pipeline_mode<synchronous>, transform_indices = @transform_0, window_bounds = array<i64: 4, 16>}, {pipeline_mode = #tpu.pipeline_mode<synchronous>, transform_indices = @transform_1, window_bounds = array<i64: 3, 64>}, {pipeline_mode = #tpu.pipeline_mode<synchronous>, transform_indices = @transform_2, window_bounds = array<i64: 8, 64>}, {pipeline_mode = #tpu.pipeline_mode<synchronous>, transform_indices = @transform_3, window_bounds = array<i64: 16, 64>}, {pipeline_mode = #tpu.pipeline_mode<synchronous>, transform_indices = @transform_4, window_bounds = array<i64: 64, 16>}, {pipeline_mode = #tpu.pipeline_mode<synchronous>, transform_indices = @transform_5, window_bounds = array<i64: 8, 4>}, {pipeline_mode = #tpu.pipeline_mode<synchronous>, transform_indices = @transform_6, window_bounds = array<i64: 2, 32, 32>}, {pipeline_mode = #tpu.pipeline_mode<synchronous>, transform_indices = @transform_7, window_bounds = array<i64: 2, 16, 8>}, {pipeline_mode = #tpu.pipeline_mode<synchronous>, transform_indices = @transform_8, window_bounds = array<i64: 2, 40, 16>}, {pipeline_mode = #tpu.pipeline_mode<synchronous>, transform_indices = @transform_9, window_bounds = array<i64: 2, 16, 16>}, {pipeline_mode = #tpu.pipeline_mode<synchronous>, transform_indices = @transform_10, window_bounds = array<i64: 2, 8, 24>}, {pipeline_mode = #tpu.pipeline_mode<synchronous>, transform_indices = @transform_11, window_bounds = array<i64: 2, 16, 32>}, {pipeline_mode = #tpu.pipeline_mode<synchronous>, transform_indices = @transform_12, window_bounds = array<i64: 2, 8, 32>}, {pipeline_mode = #tpu.pipeline_mode<synchronous>, transform_indices = @transform_13, window_bounds = array<i64: 1, 8>}, {pipeline_mode = #tpu.pipeline_mode<synchronous>, transform_indices = @transform_14, window_bounds = array<i64: 1, 16>}]} {
    %c0 = arith.constant 0 : index
    %c0_0 = arith.constant 0 : index
    %0 = vector.load %arg2[%c0, %c0_0] : memref<3x64xf32, #tpu.memory_space<vmem>>, vector<3x64xf32>
    %1 = vector.extract_strided_slice %0 {offsets = [0, 0], sizes = [1, 64], strides = [1, 1]} : vector<3x64xf32> to vector<1x64xf32>
    %2 = vector.extract_strided_slice %0 {offsets = [1, 0], sizes = [1, 64], strides = [1, 1]} : vector<3x64xf32> to vector<1x64xf32>
    %3 = vector.extract_strided_slice %0 {offsets = [2, 0], sizes = [1, 64], strides = [1, 1]} : vector<3x64xf32> to vector<1x64xf32>
    %4 = arith.mulf %1, %1 : vector<1x64xf32>
    %5 = arith.mulf %2, %2 : vector<1x64xf32>
    %6 = arith.addf %4, %5 : vector<1x64xf32>
    %7 = arith.mulf %3, %3 : vector<1x64xf32>
    %8 = arith.addf %6, %7 : vector<1x64xf32>
    %9 = math.sqrt %8 : vector<1x64xf32>
    %cst = arith.constant 9.99999996E-13 : f32
    %10 = vector.broadcast %cst : f32 to vector<1x64xf32>
    %11 = arith.maximumf %9, %10 : vector<1x64xf32>
    %cst_1 = arith.constant 1.000000e+00 : f32
    %12 = vector.broadcast %cst_1 : f32 to vector<1x64xf32>
    %13 = arith.divf %12, %11 : vector<1x64xf32>
    %c0_2 = arith.constant 0 : index
    %c0_3 = arith.constant 0 : index
    %14 = vector.load %arg3[%c0_2, %c0_3] : memref<8x64xf32, #tpu.memory_space<vmem>>, vector<8x64xf32>
    %cst_4 = arith.constant 0.632455527 : f32
    %15 = vector.broadcast %cst_4 : f32 to vector<8x64xf32>
    %16 = arith.mulf %15, %14 : vector<8x64xf32>
    %17 = vector.broadcast %13 : vector<1x64xf32> to vector<8x64xf32>
    %18 = arith.mulf %16, %17 : vector<8x64xf32>
    %cst_5 = arith.constant 2.000000e-01 : f32
    %19 = vector.broadcast %cst_5 : f32 to vector<1x64xf32>
    %20 = arith.mulf %9, %19 : vector<1x64xf32>
    %21 = arith.mulf %20, %20 : vector<1x64xf32>
    %22 = arith.mulf %21, %21 : vector<1x64xf32>
    %23 = arith.mulf %21, %22 : vector<1x64xf32>
    %24 = arith.mulf %23, %20 : vector<1x64xf32>
    %25 = arith.mulf %24, %20 : vector<1x64xf32>
    %cst_6 = arith.constant 2.800000e+01 : f32
    %26 = vector.broadcast %cst_6 : f32 to vector<1x64xf32>
    %27 = arith.mulf %26, %23 : vector<1x64xf32>
    %cst_7 = arith.constant 1.000000e+00 : f32
    %28 = vector.broadcast %cst_7 : f32 to vector<1x64xf32>
    %29 = arith.subf %28, %27 : vector<1x64xf32>
    %cst_8 = arith.constant 4.800000e+01 : f32
    %30 = vector.broadcast %cst_8 : f32 to vector<1x64xf32>
    %31 = arith.mulf %30, %24 : vector<1x64xf32>
    %32 = arith.addf %29, %31 : vector<1x64xf32>
    %cst_9 = arith.constant 2.100000e+01 : f32
    %33 = vector.broadcast %cst_9 : f32 to vector<1x64xf32>
    %34 = arith.mulf %33, %25 : vector<1x64xf32>
    %35 = arith.subf %32, %34 : vector<1x64xf32>
    %cst_10 = arith.constant 1.000000e+00 : f32
    %36 = vector.broadcast %cst_10 : f32 to vector<1x64xf32>
    %37 = arith.cmpf olt, %20, %36 : vector<1x64xf32>
    %cst_11 = arith.constant 0.000000e+00 : f32
    %38 = vector.broadcast %cst_11 : f32 to vector<1x64xf32>
    %39 = arith.select %37, %35, %38 : vector<1x64xi1>, vector<1x64xf32>
    %40 = vector.broadcast %39 : vector<1x64xf32> to vector<8x64xf32>
    %41 = arith.mulf %18, %40 : vector<8x64xf32>
    %cst_12 = arith.constant 1.73205078 : f32
    %42 = vector.broadcast %cst_12 : f32 to vector<1x64xf32>
    %43 = arith.mulf %42, %1 : vector<1x64xf32>
    %44 = arith.mulf %43, %13 : vector<1x64xf32>
    %cst_13 = arith.constant 1.73205078 : f32
    %45 = vector.broadcast %cst_13 : f32 to vector<1x64xf32>
    %46 = arith.mulf %45, %2 : vector<1x64xf32>
    %47 = arith.mulf %46, %13 : vector<1x64xf32>
    %cst_14 = arith.constant 1.73205078 : f32
    %48 = vector.broadcast %cst_14 : f32 to vector<1x64xf32>
    %49 = arith.mulf %48, %3 : vector<1x64xf32>
    %50 = arith.mulf %49, %13 : vector<1x64xf32>
    %c0_15 = arith.constant 0 : index
    %c0_16 = arith.constant 0 : index
    %51 = vector.load %arg1[%c0_15, %c0_16] : memref<4x16xbf16, #tpu.memory_space<vmem>>, vector<4x16xbf16>
    %52 = arith.extf %51 : vector<4x16xbf16> to vector<4x16xf32>
    %c0_17 = arith.constant 0 : index
    %c0_18 = arith.constant 0 : index
    %53 = vector.load %arg4[%c0_17, %c0_18] : memref<16x64xbf16, #tpu.memory_space<vmem>>, vector<16x64xbf16>
    %c0_19 = arith.constant 0 : index
    %c0_20 = arith.constant 0 : index
    %54 = vector.load %arg5[%c0_19, %c0_20] : memref<64x16xbf16, #tpu.memory_space<vmem>>, vector<64x16xbf16>
    %c0_21 = arith.constant 0 : index
    %c0_22 = arith.constant 0 : index
    %55 = vector.load %arg6[%c0_21, %c0_22] : memref<8x4xbf16, #tpu.memory_space<vmem>>, vector<8x4xbf16>
    %56 = arith.truncf %52 : vector<4x16xf32> to vector<4x16xbf16>
    %cst_23 = arith.constant dense<0.000000e+00> : vector<8x16xf32>
    %57 = tpu.matmul %55, %56, %cst_23 {dimension_numbers = #tpu.dot_dimension_numbers<[1], [0], [0], [1], [0, 0, 1, 1], [], []>} : vector<8x4xbf16>, vector<4x16xbf16>, vector<8x16xf32> -> vector<8x16xf32>
    %cst_24 = arith.constant 0.000000e+00 : f32
    %58 = vector.broadcast %cst_24 : f32 to vector<8x16xf32>
    %c0_25 = arith.constant 0 : index
    %c0_26 = arith.constant 0 : index
    %c0_27 = arith.constant 0 : index
    %59 = vector.load %arg12[%c0_25, %c0_26, %c0_27] : memref<2x16x32xbf16, #tpu.memory_space<vmem>>, vector<1x16x32xbf16>
    %60 = vector.shape_cast %59 : vector<1x16x32xbf16> to vector<16x32xbf16>
    %61 = vector.extract_strided_slice %52 {offsets = [0, 0], sizes = [1, 16], strides = [1, 1]} : vector<4x16xf32> to vector<1x16xf32>
    %62 = vector.broadcast %61 : vector<1x16xf32> to vector<8x16xf32>
    %63 = arith.mulf %62, %57 : vector<8x16xf32>
    %64 = vector.extract_strided_slice %52 {offsets = [1, 0], sizes = [1, 16], strides = [1, 1]} : vector<4x16xf32> to vector<1x16xf32>
    %65 = vector.broadcast %64 : vector<1x16xf32> to vector<8x16xf32>
    %66 = arith.mulf %65, %57 : vector<8x16xf32>
    %67 = vector.extract_strided_slice %52 {offsets = [2, 0], sizes = [1, 16], strides = [1, 1]} : vector<4x16xf32> to vector<1x16xf32>
    %68 = vector.broadcast %67 : vector<1x16xf32> to vector<8x16xf32>
    %69 = arith.mulf %68, %57 : vector<8x16xf32>
    %70 = vector.extract_strided_slice %52 {offsets = [3, 0], sizes = [1, 16], strides = [1, 1]} : vector<4x16xf32> to vector<1x16xf32>
    %71 = vector.broadcast %70 : vector<1x16xf32> to vector<8x16xf32>
    %72 = arith.mulf %71, %57 : vector<8x16xf32>
    %73 = tpu.concatenate %63, %66, %69, %72 in 0 : vector<8x16xf32>, vector<8x16xf32>, vector<8x16xf32>, vector<8x16xf32> -> vector<32x16xf32>
    %74 = arith.truncf %73 : vector<32x16xf32> to vector<32x16xbf16>
    %cst_28 = arith.constant dense<0.000000e+00> : vector<16x16xf32>
    %75 = tpu.matmul %60, %74, %cst_28 {dimension_numbers = #tpu.dot_dimension_numbers<[1], [0], [0], [1], [0, 0, 1, 1], [], []>} : vector<16x32xbf16>, vector<32x16xbf16>, vector<16x16xf32> -> vector<16x16xf32>
    %c0_29 = arith.constant 0 : index
    %c0_30 = arith.constant 0 : index
    %c0_31 = arith.constant 0 : index
    %76 = vector.load %arg13[%c0_29, %c0_30, %c0_31] : memref<2x8x32xbf16, #tpu.memory_space<vmem>>, vector<1x8x32xbf16>
    %77 = vector.shape_cast %76 : vector<1x8x32xbf16> to vector<8x32xbf16>
    %78 = vector.extract_strided_slice %52 {offsets = [0, 0], sizes = [1, 16], strides = [1, 1]} : vector<4x16xf32> to vector<1x16xf32>
    %79 = vector.broadcast %78 : vector<1x16xf32> to vector<8x16xf32>
    %80 = arith.mulf %79, %58 : vector<8x16xf32>
    %81 = vector.extract_strided_slice %52 {offsets = [1, 0], sizes = [1, 16], strides = [1, 1]} : vector<4x16xf32> to vector<1x16xf32>
    %82 = vector.broadcast %81 : vector<1x16xf32> to vector<8x16xf32>
    %83 = arith.mulf %82, %58 : vector<8x16xf32>
    %84 = vector.extract_strided_slice %52 {offsets = [2, 0], sizes = [1, 16], strides = [1, 1]} : vector<4x16xf32> to vector<1x16xf32>
    %85 = vector.broadcast %84 : vector<1x16xf32> to vector<8x16xf32>
    %86 = arith.mulf %85, %58 : vector<8x16xf32>
    %87 = vector.extract_strided_slice %52 {offsets = [3, 0], sizes = [1, 16], strides = [1, 1]} : vector<4x16xf32> to vector<1x16xf32>
    %88 = vector.broadcast %87 : vector<1x16xf32> to vector<8x16xf32>
    %89 = arith.mulf %88, %58 : vector<8x16xf32>
    %90 = tpu.concatenate %80, %83, %86, %89 in 0 : vector<8x16xf32>, vector<8x16xf32>, vector<8x16xf32>, vector<8x16xf32> -> vector<32x16xf32>
    %91 = arith.truncf %90 : vector<32x16xf32> to vector<32x16xbf16>
    %cst_32 = arith.constant dense<0.000000e+00> : vector<8x16xf32>
    %92 = tpu.matmul %77, %91, %cst_32 {dimension_numbers = #tpu.dot_dimension_numbers<[1], [0], [0], [1], [0, 0, 1, 1], [], []>} : vector<8x32xbf16>, vector<32x16xbf16>, vector<8x16xf32> -> vector<8x16xf32>
    %93 = vector.extract_strided_slice %52 {offsets = [0, 0], sizes = [1, 16], strides = [1, 1]} : vector<4x16xf32> to vector<1x16xf32>
    %94 = vector.broadcast %93 : vector<1x16xf32> to vector<8x16xf32>
    %95 = arith.mulf %94, %58 : vector<8x16xf32>
    %96 = vector.extract_strided_slice %52 {offsets = [1, 0], sizes = [1, 16], strides = [1, 1]} : vector<4x16xf32> to vector<1x16xf32>
    %97 = vector.broadcast %96 : vector<1x16xf32> to vector<8x16xf32>
    %98 = arith.mulf %97, %58 : vector<8x16xf32>
    %99 = vector.extract_strided_slice %52 {offsets = [2, 0], sizes = [1, 16], strides = [1, 1]} : vector<4x16xf32> to vector<1x16xf32>
    %100 = vector.broadcast %99 : vector<1x16xf32> to vector<8x16xf32>
    %101 = arith.mulf %100, %58 : vector<8x16xf32>
    %102 = vector.extract_strided_slice %52 {offsets = [3, 0], sizes = [1, 16], strides = [1, 1]} : vector<4x16xf32> to vector<1x16xf32>
    %103 = vector.broadcast %102 : vector<1x16xf32> to vector<8x16xf32>
    %104 = arith.mulf %103, %58 : vector<8x16xf32>
    %105 = tpu.concatenate %95, %98, %101, %104 in 0 : vector<8x16xf32>, vector<8x16xf32>, vector<8x16xf32>, vector<8x16xf32> -> vector<32x16xf32>
    %106 = arith.truncf %105 : vector<32x16xf32> to vector<32x16xbf16>
    %cst_33 = arith.constant dense<0.000000e+00> : vector<8x16xf32>
    %107 = tpu.matmul %77, %106, %cst_33 {dimension_numbers = #tpu.dot_dimension_numbers<[1], [0], [0], [1], [0, 0, 1, 1], [], []>} : vector<8x32xbf16>, vector<32x16xbf16>, vector<8x16xf32> -> vector<8x16xf32>
    %108 = vector.extract_strided_slice %52 {offsets = [0, 0], sizes = [1, 16], strides = [1, 1]} : vector<4x16xf32> to vector<1x16xf32>
    %109 = vector.broadcast %108 : vector<1x16xf32> to vector<8x16xf32>
    %110 = arith.mulf %109, %58 : vector<8x16xf32>
    %111 = vector.extract_strided_slice %52 {offsets = [1, 0], sizes = [1, 16], strides = [1, 1]} : vector<4x16xf32> to vector<1x16xf32>
    %112 = vector.broadcast %111 : vector<1x16xf32> to vector<8x16xf32>
    %113 = arith.mulf %112, %58 : vector<8x16xf32>
    %114 = vector.extract_strided_slice %52 {offsets = [2, 0], sizes = [1, 16], strides = [1, 1]} : vector<4x16xf32> to vector<1x16xf32>
    %115 = vector.broadcast %114 : vector<1x16xf32> to vector<8x16xf32>
    %116 = arith.mulf %115, %58 : vector<8x16xf32>
    %117 = vector.extract_strided_slice %52 {offsets = [3, 0], sizes = [1, 16], strides = [1, 1]} : vector<4x16xf32> to vector<1x16xf32>
    %118 = vector.broadcast %117 : vector<1x16xf32> to vector<8x16xf32>
    %119 = arith.mulf %118, %58 : vector<8x16xf32>
    %120 = tpu.concatenate %110, %113, %116, %119 in 0 : vector<8x16xf32>, vector<8x16xf32>, vector<8x16xf32>, vector<8x16xf32> -> vector<32x16xf32>
    %121 = arith.truncf %120 : vector<32x16xf32> to vector<32x16xbf16>
    %cst_34 = arith.constant dense<0.000000e+00> : vector<8x16xf32>
    %122 = tpu.matmul %77, %121, %cst_34 {dimension_numbers = #tpu.dot_dimension_numbers<[1], [0], [0], [1], [0, 0, 1, 1], [], []>} : vector<8x32xbf16>, vector<32x16xbf16>, vector<8x16xf32> -> vector<8x16xf32>
    %123 = tpu.concatenate %57, %58, %58, %58 in 0 : vector<8x16xf32>, vector<8x16xf32>, vector<8x16xf32>, vector<8x16xf32> -> vector<32x16xf32>
    %c0_35 = arith.constant 0 : index
    %c0_36 = arith.constant 0 : index
    %c0_37 = arith.constant 0 : index
    %124 = vector.load %arg7[%c0_35, %c0_36, %c0_37] : memref<2x32x32xbf16, #tpu.memory_space<vmem>>, vector<1x32x32xbf16>
    %125 = vector.shape_cast %124 : vector<1x32x32xbf16> to vector<32x32xbf16>
    %126 = arith.truncf %123 : vector<32x16xf32> to vector<32x16xbf16>
    %cst_38 = arith.constant dense<0.000000e+00> : vector<32x16xf32>
    %127 = tpu.matmul %125, %126, %cst_38 {dimension_numbers = #tpu.dot_dimension_numbers<[1], [0], [0], [1], [0, 0, 1, 1], [], []>} : vector<32x32xbf16>, vector<32x16xbf16>, vector<32x16xf32> -> vector<32x16xf32>
    %128 = arith.truncf %127 : vector<32x16xf32> to vector<32x16xbf16>
    %cst_39 = arith.constant dense<0.000000e+00> : vector<32x64xf32>
    %129 = tpu.matmul %128, %53, %cst_39 {dimension_numbers = #tpu.dot_dimension_numbers<[1], [0], [0], [1], [0, 0, 1, 1], [], []>} : vector<32x16xbf16>, vector<16x64xbf16>, vector<32x64xf32> -> vector<32x64xf32>
    %130 = vector.extract_strided_slice %129 {offsets = [0, 0], sizes = [8, 64], strides = [1, 1]} : vector<32x64xf32> to vector<8x64xf32>
    %131 = vector.extract_strided_slice %129 {offsets = [8, 0], sizes = [8, 64], strides = [1, 1]} : vector<32x64xf32> to vector<8x64xf32>
    %132 = vector.extract_strided_slice %129 {offsets = [16, 0], sizes = [8, 64], strides = [1, 1]} : vector<32x64xf32> to vector<8x64xf32>
    %133 = vector.extract_strided_slice %129 {offsets = [24, 0], sizes = [8, 64], strides = [1, 1]} : vector<32x64xf32> to vector<8x64xf32>
    %c0_40 = arith.constant 0 : index
    %c0_41 = arith.constant 0 : index
    %c0_42 = arith.constant 0 : index
    %134 = vector.load %arg8[%c0_40, %c0_41, %c0_42] : memref<2x16x8xbf16, #tpu.memory_space<vmem>>, vector<1x16x8xbf16>
    %135 = vector.shape_cast %134 : vector<1x16x8xbf16> to vector<16x8xbf16>
    %136 = arith.truncf %41 : vector<8x64xf32> to vector<8x64xbf16>
    %cst_43 = arith.constant dense<0.000000e+00> : vector<16x64xf32>
    %137 = tpu.matmul %135, %136, %cst_43 {dimension_numbers = #tpu.dot_dimension_numbers<[1], [0], [0], [1], [0, 0, 1, 1], [], []>} : vector<16x8xbf16>, vector<8x64xbf16>, vector<16x64xf32> -> vector<16x64xf32>
    %cst_44 = arith.constant 0.000000e+00 : f32
    %138 = vector.broadcast %cst_44 : f32 to vector<16x64xf32>
    %139 = arith.maximumf %137, %138 : vector<16x64xf32>
    %140 = math.absf %137 : vector<16x64xf32>
    %cst_45 = arith.constant 0.000000e+00 : f32
    %141 = vector.broadcast %cst_45 : f32 to vector<16x64xf32>
    %142 = arith.subf %141, %140 : vector<16x64xf32>
    %143 = math.exp %142 : vector<16x64xf32>
    %cst_46 = arith.constant 1.000000e+00 : f32
    %144 = vector.broadcast %cst_46 : f32 to vector<16x64xf32>
    %145 = arith.addf %144, %143 : vector<16x64xf32>
    %146 = math.log %145 : vector<16x64xf32>
    %147 = arith.addf %139, %146 : vector<16x64xf32>
    %cst_47 = arith.constant 0.693147182 : f32
    %148 = vector.broadcast %cst_47 : f32 to vector<16x64xf32>
    %149 = arith.subf %147, %148 : vector<16x64xf32>
    %c0_48 = arith.constant 0 : index
    %c0_49 = arith.constant 0 : index
    %c0_50 = arith.constant 0 : index
    %150 = vector.load %arg9[%c0_48, %c0_49, %c0_50] : memref<2x40x16xbf16, #tpu.memory_space<vmem>>, vector<1x40x16xbf16>
    %151 = vector.shape_cast %150 : vector<1x40x16xbf16> to vector<40x16xbf16>
    %152 = arith.truncf %149 : vector<16x64xf32> to vector<16x64xbf16>
    %cst_51 = arith.constant dense<0.000000e+00> : vector<40x64xf32>
    %153 = tpu.matmul %151, %152, %cst_51 {dimension_numbers = #tpu.dot_dimension_numbers<[1], [0], [0], [1], [0, 0, 1, 1], [], []>} : vector<40x16xbf16>, vector<16x64xbf16>, vector<40x64xf32> -> vector<40x64xf32>
    %154 = vector.extract_strided_slice %153 {offsets = [0, 0], sizes = [8, 64], strides = [1, 1]} : vector<40x64xf32> to vector<8x64xf32>
    %155 = vector.extract_strided_slice %153 {offsets = [8, 0], sizes = [8, 64], strides = [1, 1]} : vector<40x64xf32> to vector<8x64xf32>
    %156 = vector.extract_strided_slice %153 {offsets = [16, 0], sizes = [8, 64], strides = [1, 1]} : vector<40x64xf32> to vector<8x64xf32>
    %157 = vector.extract_strided_slice %153 {offsets = [24, 0], sizes = [8, 64], strides = [1, 1]} : vector<40x64xf32> to vector<8x64xf32>
    %158 = vector.extract_strided_slice %153 {offsets = [32, 0], sizes = [8, 64], strides = [1, 1]} : vector<40x64xf32> to vector<8x64xf32>
    %159 = arith.mulf %155, %130 : vector<8x64xf32>
    %160 = arith.mulf %154, %130 : vector<8x64xf32>
    %161 = vector.broadcast %44 : vector<1x64xf32> to vector<8x64xf32>
    %162 = arith.mulf %131, %161 : vector<8x64xf32>
    %163 = vector.broadcast %47 : vector<1x64xf32> to vector<8x64xf32>
    %164 = arith.mulf %132, %163 : vector<8x64xf32>
    %165 = arith.addf %162, %164 : vector<8x64xf32>
    %166 = vector.broadcast %50 : vector<1x64xf32> to vector<8x64xf32>
    %167 = arith.mulf %133, %166 : vector<8x64xf32>
    %168 = arith.addf %165, %167 : vector<8x64xf32>
    %169 = arith.mulf %157, %168 : vector<8x64xf32>
    %170 = vector.broadcast %44 : vector<1x64xf32> to vector<8x64xf32>
    %171 = arith.mulf %159, %170 : vector<8x64xf32>
    %172 = arith.mulf %156, %131 : vector<8x64xf32>
    %173 = vector.broadcast %50 : vector<1x64xf32> to vector<8x64xf32>
    %174 = arith.mulf %132, %173 : vector<8x64xf32>
    %175 = vector.broadcast %47 : vector<1x64xf32> to vector<8x64xf32>
    %176 = arith.mulf %133, %175 : vector<8x64xf32>
    %177 = arith.subf %174, %176 : vector<8x64xf32>
    %178 = arith.mulf %158, %177 : vector<8x64xf32>
    %179 = vector.broadcast %47 : vector<1x64xf32> to vector<8x64xf32>
    %180 = arith.mulf %159, %179 : vector<8x64xf32>
    %181 = arith.mulf %156, %132 : vector<8x64xf32>
    %182 = vector.broadcast %44 : vector<1x64xf32> to vector<8x64xf32>
    %183 = arith.mulf %133, %182 : vector<8x64xf32>
    %184 = vector.broadcast %50 : vector<1x64xf32> to vector<8x64xf32>
    %185 = arith.mulf %131, %184 : vector<8x64xf32>
    %186 = arith.subf %183, %185 : vector<8x64xf32>
    %187 = arith.mulf %158, %186 : vector<8x64xf32>
    %188 = vector.broadcast %50 : vector<1x64xf32> to vector<8x64xf32>
    %189 = arith.mulf %159, %188 : vector<8x64xf32>
    %190 = arith.mulf %156, %133 : vector<8x64xf32>
    %191 = vector.broadcast %47 : vector<1x64xf32> to vector<8x64xf32>
    %192 = arith.mulf %131, %191 : vector<8x64xf32>
    %193 = vector.broadcast %44 : vector<1x64xf32> to vector<8x64xf32>
    %194 = arith.mulf %132, %193 : vector<8x64xf32>
    %195 = arith.subf %192, %194 : vector<8x64xf32>
    %196 = arith.mulf %158, %195 : vector<8x64xf32>
    %197 = tpu.concatenate %160, %169, %171, %172, %178, %180, %181, %187, %189, %190, %196 in 0 : vector<8x64xf32>, vector<8x64xf32>, vector<8x64xf32>, vector<8x64xf32>, vector<8x64xf32>, vector<8x64xf32>, vector<8x64xf32>, vector<8x64xf32>, vector<8x64xf32>, vector<8x64xf32>, vector<8x64xf32> -> vector<88x64xf32>
    %198 = arith.truncf %197 : vector<88x64xf32> to vector<88x64xbf16>
    %cst_52 = arith.constant dense<0.000000e+00> : vector<88x16xf32>
    %199 = tpu.matmul %198, %54, %cst_52 {dimension_numbers = #tpu.dot_dimension_numbers<[1], [0], [0], [1], [0, 0, 1, 1], [], []>} : vector<88x64xbf16>, vector<64x16xbf16>, vector<88x16xf32> -> vector<88x16xf32>
    %c0_53 = arith.constant 0 : index
    %c0_54 = arith.constant 0 : index
    %c0_55 = arith.constant 0 : index
    %200 = vector.load %arg10[%c0_53, %c0_54, %c0_55] : memref<2x16x16xbf16, #tpu.memory_space<vmem>>, vector<1x16x16xbf16>
    %201 = vector.shape_cast %200 : vector<1x16x16xbf16> to vector<16x16xbf16>
    %202 = vector.extract_strided_slice %199 {offsets = [0, 0], sizes = [16, 16], strides = [1, 1]} : vector<88x16xf32> to vector<16x16xf32>
    %203 = arith.truncf %202 : vector<16x16xf32> to vector<16x16xbf16>
    %cst_56 = arith.constant dense<0.000000e+00> : vector<16x16xf32>
    %204 = tpu.matmul %201, %203, %cst_56 {dimension_numbers = #tpu.dot_dimension_numbers<[1], [0], [0], [1], [0, 0, 1, 1], [], []>} : vector<16x16xbf16>, vector<16x16xbf16>, vector<16x16xf32> -> vector<16x16xf32>
    %205 = arith.addf %204, %75 : vector<16x16xf32>
    %c0_57 = arith.constant 0 : index
    %c0_58 = arith.constant 0 : index
    %c0_59 = arith.constant 0 : index
    %206 = vector.load %arg11[%c0_57, %c0_58, %c0_59] : memref<2x8x24xbf16, #tpu.memory_space<vmem>>, vector<1x8x24xbf16>
    %207 = vector.shape_cast %206 : vector<1x8x24xbf16> to vector<8x24xbf16>
    %208 = vector.extract_strided_slice %199 {offsets = [16, 0], sizes = [24, 16], strides = [1, 1]} : vector<88x16xf32> to vector<24x16xf32>
    %209 = arith.truncf %208 : vector<24x16xf32> to vector<24x16xbf16>
    %cst_60 = arith.constant dense<0.000000e+00> : vector<8x16xf32>
    %210 = tpu.matmul %207, %209, %cst_60 {dimension_numbers = #tpu.dot_dimension_numbers<[1], [0], [0], [1], [0, 0, 1, 1], [], []>} : vector<8x24xbf16>, vector<24x16xbf16>, vector<8x16xf32> -> vector<8x16xf32>
    %211 = arith.addf %210, %92 : vector<8x16xf32>
    %212 = vector.extract_strided_slice %199 {offsets = [40, 0], sizes = [24, 16], strides = [1, 1]} : vector<88x16xf32> to vector<24x16xf32>
    %213 = arith.truncf %212 : vector<24x16xf32> to vector<24x16xbf16>
    %cst_61 = arith.constant dense<0.000000e+00> : vector<8x16xf32>
    %214 = tpu.matmul %207, %213, %cst_61 {dimension_numbers = #tpu.dot_dimension_numbers<[1], [0], [0], [1], [0, 0, 1, 1], [], []>} : vector<8x24xbf16>, vector<24x16xbf16>, vector<8x16xf32> -> vector<8x16xf32>
    %215 = arith.addf %214, %107 : vector<8x16xf32>
    %216 = vector.extract_strided_slice %199 {offsets = [64, 0], sizes = [24, 16], strides = [1, 1]} : vector<88x16xf32> to vector<24x16xf32>
    %217 = arith.truncf %216 : vector<24x16xf32> to vector<24x16xbf16>
    %cst_62 = arith.constant dense<0.000000e+00> : vector<8x16xf32>
    %218 = tpu.matmul %207, %217, %cst_62 {dimension_numbers = #tpu.dot_dimension_numbers<[1], [0], [0], [1], [0, 0, 1, 1], [], []>} : vector<8x24xbf16>, vector<24x16xbf16>, vector<8x16xf32> -> vector<8x16xf32>
    %219 = arith.addf %218, %122 : vector<8x16xf32>
    %220 = vector.extract_strided_slice %205 {offsets = [8, 0], sizes = [8, 16], strides = [1, 1]} : vector<16x16xf32> to vector<8x16xf32>
    %cst_63 = arith.constant 0.000000e+00 : f32
    %221 = vector.broadcast %cst_63 : f32 to vector<8x16xf32>
    %222 = arith.maximumf %220, %221 : vector<8x16xf32>
    %223 = math.absf %220 : vector<8x16xf32>
    %cst_64 = arith.constant 0.000000e+00 : f32
    %224 = vector.broadcast %cst_64 : f32 to vector<8x16xf32>
    %225 = arith.subf %224, %223 : vector<8x16xf32>
    %226 = math.exp %225 : vector<8x16xf32>
    %cst_65 = arith.constant 1.000000e+00 : f32
    %227 = vector.broadcast %cst_65 : f32 to vector<8x16xf32>
    %228 = arith.addf %227, %226 : vector<8x16xf32>
    %229 = math.log %228 : vector<8x16xf32>
    %230 = arith.addf %222, %229 : vector<8x16xf32>
    %cst_66 = arith.constant 0.693147182 : f32
    %231 = vector.broadcast %cst_66 : f32 to vector<8x16xf32>
    %232 = arith.subf %230, %231 : vector<8x16xf32>
    %233 = vector.extract_strided_slice %205 {offsets = [0, 0], sizes = [8, 16], strides = [1, 1]} : vector<16x16xf32> to vector<8x16xf32>
    %cst_67 = arith.constant 0.000000e+00 : f32
    %234 = vector.broadcast %cst_67 : f32 to vector<8x16xf32>
    %235 = arith.maximumf %233, %234 : vector<8x16xf32>
    %236 = math.absf %233 : vector<8x16xf32>
    %cst_68 = arith.constant 0.000000e+00 : f32
    %237 = vector.broadcast %cst_68 : f32 to vector<8x16xf32>
    %238 = arith.subf %237, %236 : vector<8x16xf32>
    %239 = math.exp %238 : vector<8x16xf32>
    %cst_69 = arith.constant 1.000000e+00 : f32
    %240 = vector.broadcast %cst_69 : f32 to vector<8x16xf32>
    %241 = arith.addf %240, %239 : vector<8x16xf32>
    %242 = math.log %241 : vector<8x16xf32>
    %243 = arith.addf %235, %242 : vector<8x16xf32>
    %cst_70 = arith.constant 0.693147182 : f32
    %244 = vector.broadcast %cst_70 : f32 to vector<8x16xf32>
    %245 = arith.subf %243, %244 : vector<8x16xf32>
    %246 = arith.mulf %211, %232 : vector<8x16xf32>
    %247 = arith.mulf %215, %232 : vector<8x16xf32>
    %248 = arith.mulf %219, %232 : vector<8x16xf32>
    %c1 = arith.constant 1 : index
    %c0_71 = arith.constant 0 : index
    %c0_72 = arith.constant 0 : index
    %249 = vector.load %arg12[%c1, %c0_71, %c0_72] : memref<2x16x32xbf16, #tpu.memory_space<vmem>>, vector<1x16x32xbf16>
    %250 = vector.shape_cast %249 : vector<1x16x32xbf16> to vector<16x32xbf16>
    %251 = vector.extract_strided_slice %52 {offsets = [0, 0], sizes = [1, 16], strides = [1, 1]} : vector<4x16xf32> to vector<1x16xf32>
    %252 = vector.broadcast %251 : vector<1x16xf32> to vector<8x16xf32>
    %253 = arith.mulf %252, %245 : vector<8x16xf32>
    %254 = vector.extract_strided_slice %52 {offsets = [1, 0], sizes = [1, 16], strides = [1, 1]} : vector<4x16xf32> to vector<1x16xf32>
    %255 = vector.broadcast %254 : vector<1x16xf32> to vector<8x16xf32>
    %256 = arith.mulf %255, %245 : vector<8x16xf32>
    %257 = vector.extract_strided_slice %52 {offsets = [2, 0], sizes = [1, 16], strides = [1, 1]} : vector<4x16xf32> to vector<1x16xf32>
    %258 = vector.broadcast %257 : vector<1x16xf32> to vector<8x16xf32>
    %259 = arith.mulf %258, %245 : vector<8x16xf32>
    %260 = vector.extract_strided_slice %52 {offsets = [3, 0], sizes = [1, 16], strides = [1, 1]} : vector<4x16xf32> to vector<1x16xf32>
    %261 = vector.broadcast %260 : vector<1x16xf32> to vector<8x16xf32>
    %262 = arith.mulf %261, %245 : vector<8x16xf32>
    %263 = tpu.concatenate %253, %256, %259, %262 in 0 : vector<8x16xf32>, vector<8x16xf32>, vector<8x16xf32>, vector<8x16xf32> -> vector<32x16xf32>
    %264 = arith.truncf %263 : vector<32x16xf32> to vector<32x16xbf16>
    %cst_73 = arith.constant dense<0.000000e+00> : vector<16x16xf32>
    %265 = tpu.matmul %250, %264, %cst_73 {dimension_numbers = #tpu.dot_dimension_numbers<[1], [0], [0], [1], [0, 0, 1, 1], [], []>} : vector<16x32xbf16>, vector<32x16xbf16>, vector<16x16xf32> -> vector<16x16xf32>
    %266 = tpu.concatenate %245, %246, %247, %248 in 0 : vector<8x16xf32>, vector<8x16xf32>, vector<8x16xf32>, vector<8x16xf32> -> vector<32x16xf32>
    %c1_74 = arith.constant 1 : index
    %c0_75 = arith.constant 0 : index
    %c0_76 = arith.constant 0 : index
    %267 = vector.load %arg7[%c1_74, %c0_75, %c0_76] : memref<2x32x32xbf16, #tpu.memory_space<vmem>>, vector<1x32x32xbf16>
    %268 = vector.shape_cast %267 : vector<1x32x32xbf16> to vector<32x32xbf16>
    %269 = arith.truncf %266 : vector<32x16xf32> to vector<32x16xbf16>
    %cst_77 = arith.constant dense<0.000000e+00> : vector<32x16xf32>
    %270 = tpu.matmul %268, %269, %cst_77 {dimension_numbers = #tpu.dot_dimension_numbers<[1], [0], [0], [1], [0, 0, 1, 1], [], []>} : vector<32x32xbf16>, vector<32x16xbf16>, vector<32x16xf32> -> vector<32x16xf32>
    %271 = arith.truncf %270 : vector<32x16xf32> to vector<32x16xbf16>
    %cst_78 = arith.constant dense<0.000000e+00> : vector<32x64xf32>
    %272 = tpu.matmul %271, %53, %cst_78 {dimension_numbers = #tpu.dot_dimension_numbers<[1], [0], [0], [1], [0, 0, 1, 1], [], []>} : vector<32x16xbf16>, vector<16x64xbf16>, vector<32x64xf32> -> vector<32x64xf32>
    %273 = vector.extract_strided_slice %272 {offsets = [0, 0], sizes = [8, 64], strides = [1, 1]} : vector<32x64xf32> to vector<8x64xf32>
    %274 = vector.extract_strided_slice %272 {offsets = [8, 0], sizes = [8, 64], strides = [1, 1]} : vector<32x64xf32> to vector<8x64xf32>
    %275 = vector.extract_strided_slice %272 {offsets = [16, 0], sizes = [8, 64], strides = [1, 1]} : vector<32x64xf32> to vector<8x64xf32>
    %276 = vector.extract_strided_slice %272 {offsets = [24, 0], sizes = [8, 64], strides = [1, 1]} : vector<32x64xf32> to vector<8x64xf32>
    %c1_79 = arith.constant 1 : index
    %c0_80 = arith.constant 0 : index
    %c0_81 = arith.constant 0 : index
    %277 = vector.load %arg8[%c1_79, %c0_80, %c0_81] : memref<2x16x8xbf16, #tpu.memory_space<vmem>>, vector<1x16x8xbf16>
    %278 = vector.shape_cast %277 : vector<1x16x8xbf16> to vector<16x8xbf16>
    %279 = arith.truncf %41 : vector<8x64xf32> to vector<8x64xbf16>
    %cst_82 = arith.constant dense<0.000000e+00> : vector<16x64xf32>
    %280 = tpu.matmul %278, %279, %cst_82 {dimension_numbers = #tpu.dot_dimension_numbers<[1], [0], [0], [1], [0, 0, 1, 1], [], []>} : vector<16x8xbf16>, vector<8x64xbf16>, vector<16x64xf32> -> vector<16x64xf32>
    %cst_83 = arith.constant 0.000000e+00 : f32
    %281 = vector.broadcast %cst_83 : f32 to vector<16x64xf32>
    %282 = arith.maximumf %280, %281 : vector<16x64xf32>
    %283 = math.absf %280 : vector<16x64xf32>
    %cst_84 = arith.constant 0.000000e+00 : f32
    %284 = vector.broadcast %cst_84 : f32 to vector<16x64xf32>
    %285 = arith.subf %284, %283 : vector<16x64xf32>
    %286 = math.exp %285 : vector<16x64xf32>
    %cst_85 = arith.constant 1.000000e+00 : f32
    %287 = vector.broadcast %cst_85 : f32 to vector<16x64xf32>
    %288 = arith.addf %287, %286 : vector<16x64xf32>
    %289 = math.log %288 : vector<16x64xf32>
    %290 = arith.addf %282, %289 : vector<16x64xf32>
    %cst_86 = arith.constant 0.693147182 : f32
    %291 = vector.broadcast %cst_86 : f32 to vector<16x64xf32>
    %292 = arith.subf %290, %291 : vector<16x64xf32>
    %c1_87 = arith.constant 1 : index
    %c0_88 = arith.constant 0 : index
    %c0_89 = arith.constant 0 : index
    %293 = vector.load %arg9[%c1_87, %c0_88, %c0_89] : memref<2x40x16xbf16, #tpu.memory_space<vmem>>, vector<1x40x16xbf16>
    %294 = vector.shape_cast %293 : vector<1x40x16xbf16> to vector<40x16xbf16>
    %295 = arith.truncf %292 : vector<16x64xf32> to vector<16x64xbf16>
    %cst_90 = arith.constant dense<0.000000e+00> : vector<40x64xf32>
    %296 = tpu.matmul %294, %295, %cst_90 {dimension_numbers = #tpu.dot_dimension_numbers<[1], [0], [0], [1], [0, 0, 1, 1], [], []>} : vector<40x16xbf16>, vector<16x64xbf16>, vector<40x64xf32> -> vector<40x64xf32>
    %297 = vector.extract_strided_slice %296 {offsets = [0, 0], sizes = [8, 64], strides = [1, 1]} : vector<40x64xf32> to vector<8x64xf32>
    %298 = vector.extract_strided_slice %296 {offsets = [8, 0], sizes = [8, 64], strides = [1, 1]} : vector<40x64xf32> to vector<8x64xf32>
    %299 = vector.extract_strided_slice %296 {offsets = [16, 0], sizes = [8, 64], strides = [1, 1]} : vector<40x64xf32> to vector<8x64xf32>
    %300 = vector.extract_strided_slice %296 {offsets = [24, 0], sizes = [8, 64], strides = [1, 1]} : vector<40x64xf32> to vector<8x64xf32>
    %301 = vector.extract_strided_slice %296 {offsets = [32, 0], sizes = [8, 64], strides = [1, 1]} : vector<40x64xf32> to vector<8x64xf32>
    %302 = arith.mulf %298, %273 : vector<8x64xf32>
    %303 = arith.mulf %297, %273 : vector<8x64xf32>
    %304 = vector.broadcast %44 : vector<1x64xf32> to vector<8x64xf32>
    %305 = arith.mulf %274, %304 : vector<8x64xf32>
    %306 = vector.broadcast %47 : vector<1x64xf32> to vector<8x64xf32>
    %307 = arith.mulf %275, %306 : vector<8x64xf32>
    %308 = arith.addf %305, %307 : vector<8x64xf32>
    %309 = vector.broadcast %50 : vector<1x64xf32> to vector<8x64xf32>
    %310 = arith.mulf %276, %309 : vector<8x64xf32>
    %311 = arith.addf %308, %310 : vector<8x64xf32>
    %312 = arith.mulf %300, %311 : vector<8x64xf32>
    %313 = vector.broadcast %44 : vector<1x64xf32> to vector<8x64xf32>
    %314 = arith.mulf %302, %313 : vector<8x64xf32>
    %315 = arith.mulf %299, %274 : vector<8x64xf32>
    %316 = vector.broadcast %50 : vector<1x64xf32> to vector<8x64xf32>
    %317 = arith.mulf %275, %316 : vector<8x64xf32>
    %318 = vector.broadcast %47 : vector<1x64xf32> to vector<8x64xf32>
    %319 = arith.mulf %276, %318 : vector<8x64xf32>
    %320 = arith.subf %317, %319 : vector<8x64xf32>
    %321 = arith.mulf %301, %320 : vector<8x64xf32>
    %322 = vector.broadcast %47 : vector<1x64xf32> to vector<8x64xf32>
    %323 = arith.mulf %302, %322 : vector<8x64xf32>
    %324 = arith.mulf %299, %275 : vector<8x64xf32>
    %325 = vector.broadcast %44 : vector<1x64xf32> to vector<8x64xf32>
    %326 = arith.mulf %276, %325 : vector<8x64xf32>
    %327 = vector.broadcast %50 : vector<1x64xf32> to vector<8x64xf32>
    %328 = arith.mulf %274, %327 : vector<8x64xf32>
    %329 = arith.subf %326, %328 : vector<8x64xf32>
    %330 = arith.mulf %301, %329 : vector<8x64xf32>
    %331 = vector.broadcast %50 : vector<1x64xf32> to vector<8x64xf32>
    %332 = arith.mulf %302, %331 : vector<8x64xf32>
    %333 = arith.mulf %299, %276 : vector<8x64xf32>
    %334 = vector.broadcast %47 : vector<1x64xf32> to vector<8x64xf32>
    %335 = arith.mulf %274, %334 : vector<8x64xf32>
    %336 = vector.broadcast %44 : vector<1x64xf32> to vector<8x64xf32>
    %337 = arith.mulf %275, %336 : vector<8x64xf32>
    %338 = arith.subf %335, %337 : vector<8x64xf32>
    %339 = arith.mulf %301, %338 : vector<8x64xf32>
    %340 = tpu.concatenate %303, %312, %314, %315, %321, %323, %324, %330, %332, %333, %339 in 0 : vector<8x64xf32>, vector<8x64xf32>, vector<8x64xf32>, vector<8x64xf32>, vector<8x64xf32>, vector<8x64xf32>, vector<8x64xf32>, vector<8x64xf32>, vector<8x64xf32>, vector<8x64xf32>, vector<8x64xf32> -> vector<88x64xf32>
    %341 = arith.truncf %340 : vector<88x64xf32> to vector<88x64xbf16>
    %cst_91 = arith.constant dense<0.000000e+00> : vector<88x16xf32>
    %342 = tpu.matmul %341, %54, %cst_91 {dimension_numbers = #tpu.dot_dimension_numbers<[1], [0], [0], [1], [0, 0, 1, 1], [], []>} : vector<88x64xbf16>, vector<64x16xbf16>, vector<88x16xf32> -> vector<88x16xf32>
    %c1_92 = arith.constant 1 : index
    %c0_93 = arith.constant 0 : index
    %c0_94 = arith.constant 0 : index
    %343 = vector.load %arg10[%c1_92, %c0_93, %c0_94] : memref<2x16x16xbf16, #tpu.memory_space<vmem>>, vector<1x16x16xbf16>
    %344 = vector.shape_cast %343 : vector<1x16x16xbf16> to vector<16x16xbf16>
    %345 = vector.extract_strided_slice %342 {offsets = [0, 0], sizes = [16, 16], strides = [1, 1]} : vector<88x16xf32> to vector<16x16xf32>
    %346 = arith.truncf %345 : vector<16x16xf32> to vector<16x16xbf16>
    %cst_95 = arith.constant dense<0.000000e+00> : vector<16x16xf32>
    %347 = tpu.matmul %344, %346, %cst_95 {dimension_numbers = #tpu.dot_dimension_numbers<[1], [0], [0], [1], [0, 0, 1, 1], [], []>} : vector<16x16xbf16>, vector<16x16xbf16>, vector<16x16xf32> -> vector<16x16xf32>
    %348 = arith.addf %347, %265 : vector<16x16xf32>
    %349 = vector.extract_strided_slice %348 {offsets = [0, 0], sizes = [8, 16], strides = [1, 1]} : vector<16x16xf32> to vector<8x16xf32>
    %cst_96 = arith.constant 0.000000e+00 : f32
    %350 = vector.broadcast %cst_96 : f32 to vector<8x16xf32>
    %351 = arith.maximumf %349, %350 : vector<8x16xf32>
    %352 = math.absf %349 : vector<8x16xf32>
    %cst_97 = arith.constant 0.000000e+00 : f32
    %353 = vector.broadcast %cst_97 : f32 to vector<8x16xf32>
    %354 = arith.subf %353, %352 : vector<8x16xf32>
    %355 = math.exp %354 : vector<8x16xf32>
    %cst_98 = arith.constant 1.000000e+00 : f32
    %356 = vector.broadcast %cst_98 : f32 to vector<8x16xf32>
    %357 = arith.addf %356, %355 : vector<8x16xf32>
    %358 = math.log %357 : vector<8x16xf32>
    %359 = arith.addf %351, %358 : vector<8x16xf32>
    %cst_99 = arith.constant 0.693147182 : f32
    %360 = vector.broadcast %cst_99 : f32 to vector<8x16xf32>
    %361 = arith.subf %359, %360 : vector<8x16xf32>
    %c0_100 = arith.constant 0 : index
    %c0_101 = arith.constant 0 : index
    %362 = vector.load %arg14[%c0_100, %c0_101] : memref<1x8xbf16, #tpu.memory_space<vmem>>, vector<1x8xbf16>
    %363 = arith.truncf %361 : vector<8x16xf32> to vector<8x16xbf16>
    %cst_102 = arith.constant dense<0.000000e+00> : vector<1x16xf32>
    %364 = tpu.matmul %362, %363, %cst_102 {dimension_numbers = #tpu.dot_dimension_numbers<[1], [0], [0], [1], [0, 0, 1, 1], [], []>} : vector<1x8xbf16>, vector<8x16xbf16>, vector<1x16xf32> -> vector<1x16xf32>
    %c0_103 = arith.constant 0 : index
    %c0_104 = arith.constant 0 : index
    %365 = vector.load %arg15[%c0_103, %c0_104] : memref<1x16xf32, #tpu.memory_space<vmem>>, vector<1x16xf32>
    tpu.vector_store %arg15[%c0_103, %c0_104], %364 {strides = array<i32>} : memref<1x16xf32, #tpu.memory_space<vmem>>, vector<1x16xf32>,
    return
  }
  func.func @transform_0(%arg0: i32) -> (i32, i32) {
    %c0_i32 = arith.constant 0 : i32
    %c0_i32_0 = arith.constant 0 : i32
    %c0_i32_1 = arith.constant 0 : i32
    return %c0_i32, %c0_i32_0 : i32, i32
  }
  func.func @transform_1(%arg0: i32) -> (i32, i32) {
    %c0_i32 = arith.constant 0 : i32
    %c0_i32_0 = arith.constant 0 : i32
    %c0_i32_1 = arith.constant 0 : i32
    return %c0_i32, %c0_i32_0 : i32, i32
  }
  func.func @transform_2(%arg0: i32) -> (i32, i32) {
    %c0_i32 = arith.constant 0 : i32
    %c0_i32_0 = arith.constant 0 : i32
    %c0_i32_1 = arith.constant 0 : i32
    return %c0_i32, %c0_i32_0 : i32, i32
  }
  func.func @transform_3(%arg0: i32) -> (i32, i32) {
    %c0_i32 = arith.constant 0 : i32
    %c0_i32_0 = arith.constant 0 : i32
    %c0_i32_1 = arith.constant 0 : i32
    return %c0_i32, %c0_i32_0 : i32, i32
  }
  func.func @transform_4(%arg0: i32) -> (i32, i32) {
    %c0_i32 = arith.constant 0 : i32
    %c0_i32_0 = arith.constant 0 : i32
    %c0_i32_1 = arith.constant 0 : i32
    return %c0_i32, %c0_i32_0 : i32, i32
  }
  func.func @transform_5(%arg0: i32) -> (i32, i32) {
    %c0_i32 = arith.constant 0 : i32
    %c0_i32_0 = arith.constant 0 : i32
    %c0_i32_1 = arith.constant 0 : i32
    return %c0_i32, %c0_i32_0 : i32, i32
  }
  func.func @transform_6(%arg0: i32) -> (i32, i32, i32) {
    %c0_i32 = arith.constant 0 : i32
    %c0_i32_0 = arith.constant 0 : i32
    %c0_i32_1 = arith.constant 0 : i32
    %c0_i32_2 = arith.constant 0 : i32
    return %c0_i32, %c0_i32_0, %c0_i32_1 : i32, i32, i32
  }
  func.func @transform_7(%arg0: i32) -> (i32, i32, i32) {
    %c0_i32 = arith.constant 0 : i32
    %c0_i32_0 = arith.constant 0 : i32
    %c0_i32_1 = arith.constant 0 : i32
    %c0_i32_2 = arith.constant 0 : i32
    return %c0_i32, %c0_i32_0, %c0_i32_1 : i32, i32, i32
  }
  func.func @transform_8(%arg0: i32) -> (i32, i32, i32) {
    %c0_i32 = arith.constant 0 : i32
    %c0_i32_0 = arith.constant 0 : i32
    %c0_i32_1 = arith.constant 0 : i32
    %c0_i32_2 = arith.constant 0 : i32
    return %c0_i32, %c0_i32_0, %c0_i32_1 : i32, i32, i32
  }
  func.func @transform_9(%arg0: i32) -> (i32, i32, i32) {
    %c0_i32 = arith.constant 0 : i32
    %c0_i32_0 = arith.constant 0 : i32
    %c0_i32_1 = arith.constant 0 : i32
    %c0_i32_2 = arith.constant 0 : i32
    return %c0_i32, %c0_i32_0, %c0_i32_1 : i32, i32, i32
  }
  func.func @transform_10(%arg0: i32) -> (i32, i32, i32) {
    %c0_i32 = arith.constant 0 : i32
    %c0_i32_0 = arith.constant 0 : i32
    %c0_i32_1 = arith.constant 0 : i32
    %c0_i32_2 = arith.constant 0 : i32
    return %c0_i32, %c0_i32_0, %c0_i32_1 : i32, i32, i32
  }
  func.func @transform_11(%arg0: i32) -> (i32, i32, i32) {
    %c0_i32 = arith.constant 0 : i32
    %c0_i32_0 = arith.constant 0 : i32
    %c0_i32_1 = arith.constant 0 : i32
    %c0_i32_2 = arith.constant 0 : i32
    return %c0_i32, %c0_i32_0, %c0_i32_1 : i32, i32, i32
  }
  func.func @transform_12(%arg0: i32) -> (i32, i32, i32) {
    %c0_i32 = arith.constant 0 : i32
    %c0_i32_0 = arith.constant 0 : i32
    %c0_i32_1 = arith.constant 0 : i32
    %c0_i32_2 = arith.constant 0 : i32
    return %c0_i32, %c0_i32_0, %c0_i32_1 : i32, i32, i32
  }
  func.func @transform_13(%arg0: i32) -> (i32, i32) {
    %c0_i32 = arith.constant 0 : i32
    %c0_i32_0 = arith.constant 0 : i32
    %c0_i32_1 = arith.constant 0 : i32
    return %c0_i32, %c0_i32_0 : i32, i32
  }
  func.func @transform_14(%arg0: i32) -> (i32, i32) {
    %c0_i32 = arith.constant 0 : i32
    %c0_i32_0 = arith.constant 0 : i32
    %c0_i32_1 = arith.constant 0 : i32
    return %c0_i32, %c0_i32_0 : i32, i32
  }
}

</mosaic_0001>

<llo_original>
// kernel: tpu_custom_call.1
$region0: #{tpu_custom_call.1}
  #allocation0 [shape = 'u32[]', space=smem, size = 0x4, offset = 0x4, fixed_abs, tag = 'smem constant byte address 0x4 - core index']
  #allocation1 [shape = 'u32[144,128]{1,0:T(1,128)}', space=vmem, size = 0x12000, scoped, tag = 'internal scratch']
  %s0 = inlined_call_operand.vmem [shape: bf16[4,16], index: 0, kind: input, shape index: {}]
  %s1 = inlined_call_operand.vmem [shape: f32[3,64], index: 1, kind: input, shape index: {}]
  %s2 = inlined_call_operand.vmem [shape: f32[8,64], index: 2, kind: input, shape index: {}]
  %s3 = inlined_call_operand.vmem [shape: bf16[16,64], index: 3, kind: input, shape index: {}]
  %s4 = inlined_call_operand.vmem [shape: bf16[64,16], index: 4, kind: input, shape index: {}]
  %s5 = inlined_call_operand.vmem [shape: bf16[8,4], index: 5, kind: input, shape index: {}]
  %s6 = inlined_call_operand.vmem [shape: bf16[2,32,32], index: 6, kind: input, shape index: {}]
  %s7 = inlined_call_operand.vmem [shape: bf16[2,16,8], index: 7, kind: input, shape index: {}]
  %s8 = inlined_call_operand.vmem [shape: bf16[2,40,16], index: 8, kind: input, shape index: {}]
  %s9 = inlined_call_operand.vmem [shape: bf16[2,16,16], index: 9, kind: input, shape index: {}]
  %s10 = inlined_call_operand.vmem [shape: bf16[2,8,24], index: 10, kind: input, shape index: {}]
  %s11 = inlined_call_operand.vmem [shape: bf16[2,16,32], index: 11, kind: input, shape index: {}]
  %s12 = inlined_call_operand.vmem [shape: bf16[2,8,32], index: 12, kind: input, shape index: {}]
  %s13 = inlined_call_operand.vmem [shape: bf16[1,8], index: 13, kind: input, shape index: {}]
  %s14 = inlined_call_operand.hbm [shape: f32[1,16], index: 14, kind: output, shape index: {}]
  %s15 = sld [smem:[#allocation0]]
  $region66: #{tpu_custom_call.1} parent=0
    _
  %s17 = ssub.s32 1, %s15
  %s18 = scalar_select 0, %s17, %s15
  $region1: #{tpu_custom_call.1} parent=0
    #allocation2 [shape = 'u8[512]{0}', space=vmem, size = 0x400, scoped, tag = 'output window, operand 0, single buffered']
    #allocation3 [shape = 's32[1]{0}', space=sflag, size = 0x4, scoped, tag = 'scoped memory for tpu_custom_call.1']
    %19 = vsyncpa [#allocation3], 0
    // Predicated region
    $region2: #{tpu_custom_call.1} parent=1 // pred_check
      _
    $region3: #{tpu_custom_call.1} parent=1 // pred_check_branch
      %21 = sbr.rel (0) target = $region5
    $region4: #{tpu_custom_call.1} parent=1 // pred_region
      _
    $region5: #{tpu_custom_call.1} parent=1 // pred_fallthru
      _
    // Predicated region
    $region6: #{tpu_custom_call.1} parent=1 // pred_check
      _
    $region7: #{tpu_custom_call.1} parent=1 // pred_check_branch
      %23 = sbr.rel (0) target = $region9
    $region8: #{tpu_custom_call.1} parent=1 // pred_region
      _
    $region9: #{tpu_custom_call.1} parent=1 // pred_fallthru
      _
    // Predicated region
    $region10: #{tpu_custom_call.1} parent=1 // pred_check
      _
    $region11: #{tpu_custom_call.1} parent=1 // pred_check_branch
      %25 = sbr.rel (0) target = $region13
    $region12: #{tpu_custom_call.1} parent=1 // pred_region
      _
    $region13: #{tpu_custom_call.1} parent=1 // pred_fallthru
      _
    // Predicated region
    $region14: #{tpu_custom_call.1} parent=1 // pred_check
      _
    $region15: #{tpu_custom_call.1} parent=1 // pred_check_branch
      %27 = sbr.rel (0) target = $region17
    $region16: #{tpu_custom_call.1} parent=1 // pred_region
      _
    $region17: #{tpu_custom_call.1} parent=1 // pred_fallthru
      _
    // Predicated region
    $region18: #{tpu_custom_call.1} parent=1 // pred_check
      _
    $region19: #{tpu_custom_call.1} parent=1 // pred_check_branch
      %29 = sbr.rel (0) target = $region21
    $region20: #{tpu_custom_call.1} parent=1 // pred_region
      _
    $region21: #{tpu_custom_call.1} parent=1 // pred_fallthru
      _
    // Predicated region
    $region22: #{tpu_custom_call.1} parent=1 // pred_check
      _
    $region23: #{tpu_custom_call.1} parent=1 // pred_check_branch
      %31 = sbr.rel (0) target = $region25
    $region24: #{tpu_custom_call.1} parent=1 // pred_region
      _
    $region25: #{tpu_custom_call.1} parent=1 // pred_fallthru
      _
    // Predicated region
    $region26: #{tpu_custom_call.1} parent=1 // pred_check
      _
    $region27: #{tpu_custom_call.1} parent=1 // pred_check_branch
      %33 = sbr.rel (0) target = $region29
    $region28: #{tpu_custom_call.1} parent=1 // pred_region
      _
    $region29: #{tpu_custom_call.1} parent=1 // pred_fallthru
      _
    // Predicated region
    $region30: #{tpu_custom_call.1} parent=1 // pred_check
      _
    $region31: #{tpu_custom_call.1} parent=1 // pred_check_branch
      %35 = sbr.rel (0) target = $region33
    $region32: #{tpu_custom_call.1} parent=1 // pred_region
      _
    $region33: #{tpu_custom_call.1} parent=1 // pred_fallthru
      _
    // Predicated region
    $region34: #{tpu_custom_call.1} parent=1 // pred_check
      _
    $region35: #{tpu_custom_call.1} parent=1 // pred_check_branch
      %37 = sbr.rel (0) target = $region37
    $region36: #{tpu_custom_call.1} parent=1 // pred_region
      _
    $region37: #{tpu_custom_call.1} parent=1 // pred_fallthru
      _
    // Predicated region
    $region38: #{tpu_custom_call.1} parent=1 // pred_check
      _
    $region39: #{tpu_custom_call.1} parent=1 // pred_check_branch
      %39 = sbr.rel (0) target = $region41
    $region40: #{tpu_custom_call.1} parent=1 // pred_region
      _
    $region41: #{tpu_custom_call.1} parent=1 // pred_fallthru
      _
    // Predicated region
    $region42: #{tpu_custom_call.1} parent=1 // pred_check
      _
    $region43: #{tpu_custom_call.1} parent=1 // pred_check_branch
      %41 = sbr.rel (0) target = $region45
    $region44: #{tpu_custom_call.1} parent=1 // pred_region
      _
    $region45: #{tpu_custom_call.1} parent=1 // pred_fallthru
      _
    // Predicated region
    $region46: #{tpu_custom_call.1} parent=1 // pred_check
      _
    $region47: #{tpu_custom_call.1} parent=1 // pred_check_branch
      %43 = sbr.rel (0) target = $region49
    $region48: #{tpu_custom_call.1} parent=1 // pred_region
      _
    $region49: #{tpu_custom_call.1} parent=1 // pred_fallthru
      _
    // Predicated region
    $region50: #{tpu_custom_call.1} parent=1 // pred_check
      _
    $region51: #{tpu_custom_call.1} parent=1 // pred_check_branch
      %45 = sbr.rel (0) target = $region53
    $region52: #{tpu_custom_call.1} parent=1 // pred_region
      _
    $region53: #{tpu_custom_call.1} parent=1 // pred_fallthru
      _
    // Predicated region
    $region54: #{tpu_custom_call.1} parent=1 // pred_check
      _
    $region55: #{tpu_custom_call.1} parent=1 // pred_check_branch
      %47 = sbr.rel (0) target = $region57
    $region56: #{tpu_custom_call.1} parent=1 // pred_region
      _
    $region57: #{tpu_custom_call.1} parent=1 // pred_fallthru
      _
    %v49 = vld [vmem:[%s1] sm:$0x7]
    %v50 = vmul.f32 %v49, %v49
    %v52 = vrot.slane %v50, 1
    %v54 = vadd.f32 %v50, %v52
    %v55 = vrot.slane %v50, 2
    %v57 = vadd.f32 %v54, %v55
    %v58 = vrsqrt.pop %v57
    %v59 = vmul.f32 %v57, %v58
    %vm60 = vcmp.eq.f32.partialorder %v57, inf
    %v61 = vsel %vm60, %v57, %v59
    %vm62 = vcmp.eq.f32.partialorder %v57, 0.0
    %v63 = vand.u32 %v57, 2147483648
    %v64 = vsel %vm62, %v63, %v61
    %v65 = vmax.f32 %v64, 1e-12
    %v66 = vrcp.pop %v65
    %v67 = vmul.f32 1.0, %v66
    %v68 = vld [vmem:[%s2] sm:$0xff]
    %v69 = vmul.f32 %v68, 0.6324555
    %v70 = vlaneseq
    %v71 = vshrl.u32 %v70, 7
    %v72 = vsub.s32 0, %v71
    %v73 = vrot.slane %v67, %v72
    %v74 = vmul.f32 %v69, %v73
    %v75 = vmul.f32 %v64, 0.2
    %v76 = vmul.f32 %v75, %v75
    %v77 = vmul.f32 %v76, %v76
    %v78 = vmul.f32 %v76, %v77
    %v79 = vmul.f32 %v78, %v75
    %v80 = vmul.f32 %v79, %v75
    %v81 = vmul.f32 %v78, 28.0
    %v82 = vsub.f32 1.0, %v81
    %v83 = vmul.f32 %v79, 48.0
    %v84 = vadd.f32 %v82, %v83
    %v85 = vmul.f32 %v80, 21.0
    %v86 = vsub.f32 %v84, %v85
    %vm87 = vcmp.lt.f32.partialorder %v75, 1.0
    %v88 = vsel %vm87, %v86, 0.0
    %v89 = vlaneseq
    %v90 = vshrl.u32 %v89, 7
    %v91 = vsub.s32 0, %v90
    %v92 = vrot.slane %v88, %v91
    %v93 = vmul.f32 %v74, %v92
    %v94 = vmul.f32 %v49, 1.7320508
    %v95 = vmul.f32 %v94, %v67
    %v97 = vrot.slane %v67, 7
    %v99 = vmul.f32 %v94, %v97
    %v100 = vrot.slane %v67, 6
    %v102 = vmul.f32 %v94, %v100
    %v103 = vld [vmem:[%s0] sm:$0x3]
    %v104 = vunpack.c.l.bf16 %v103
    %v105 = vld [vmem:[%s3] sm:$0xf]
    %v106 = vld [vmem:[%s3 + $0x4] sm:$0xf]
    %v107 = vld [vmem:[%s4] sm:$0xf]
    %v108 = vld [vmem:[%s4 + $0x4] sm:$0xf]
    %v109 = vld [vmem:[%s4 + $0x8] sm:$0xf]
    %v110 = vld [vmem:[%s4 + $0xc] sm:$0xf]
    %v111 = vld [vmem:[%s4 + $0x10] sm:$0xf]
    %v112 = vld [vmem:[%s4 + $0x14] sm:$0xf]
    %v113 = vld [vmem:[%s4 + $0x18] sm:$0xf]
    %v114 = vld [vmem:[%s4 + $0x1c] sm:$0xf]
    %v115 = vld [vmem:[%s5] sm:$0xf]
    %vm116 = vcmask 31744
    %v118 = vsel %vm116, %v115, 0
    %vm120 = vcmask 1041408
    %v122 = vsel %vm120, %v103, 0
    %124 = vmatprep.subr.bf16.mxu0 0
    %125 = vmatpush1.bf16.msra.mxu0 %v122
    %126 = vmatprep.subr.bf16.mxu0 0
    %127 = vmatpush1.bf16.msra.mxu0 0
    %128 = vmatprep.subr.bf16.mxu0 0
    %129 = vmatpush1.bf16.msra.mxu0 0
    %130 = vmatprep.subr.bf16.mxu0 0
    %131 = vmatpush1.bf16.msra.mxu0 0
    %132 = vmatprep.subr.bf16.mxu0 0
    %133 = vmatpush1.bf16.msra.mxu0 0
    %134 = vmatprep.subr.bf16.mxu0 0
    %135 = vmatpush1.bf16.msra.mxu0 0
    %136 = vmatprep.subr.bf16.mxu0 0
    %137 = vmatpush1.bf16.msra.mxu0 0
    %138 = vmatprep.subr.bf16.mxu0 0
    %139 = vmatpush1.bf16.msra.mxu0 0
    %140 = vmatprep.subr.bf16.mxu0 0
    %141 = vmatpush1.bf16.msra.mxu0 0
    %142 = vmatprep.subr.bf16.mxu0 0
    %143 = vmatpush1.bf16.msra.mxu0 0
    %144 = vmatprep.subr.bf16.mxu0 0
    %145 = vmatpush1.bf16.msra.mxu0 0
    %146 = vmatprep.subr.bf16.mxu0 0
    %147 = vmatpush1.bf16.msra.mxu0 0
    %148 = vmatprep.subr.bf16.mxu0 0
    %149 = vmatpush1.bf16.msra.mxu0 0
    %150 = vmatprep.subr.bf16.mxu0 0
    %151 = vmatpush1.bf16.msra.mxu0 0
    %152 = vmatprep.subr.bf16.mxu0 0
    %153 = vmatpush1.bf16.msra.mxu0 0
    %154 = vmatprep.subr.bf16.mxu0 0
    %155 = vmatpush1.bf16.msra.mxu0 0
    %156 = vmatprep.mubr.bf16.mxu0 0
    %157 = vmatmul.mubr.bf16.gmra.mrb[0].mxu0 %v118
    %v158 = vpop.f32.mrb[0].mxu0
    %v159 = vadd.f32 0.0, %v158
    %v160 = vpop.f32.mrb[0].mxu0
    %v161 = vpop.f32.mrb[0].mxu0
    %v162 = vpop.f32.mrb[0].mxu0
    %163 = vdwg.mxu0
    %v164 = vld [vmem:[%s11] sm:$0xf]
    %v165 = vld [vmem:[%s11 + $0x4] sm:$0xf]
    %v166 = vlaneseq
    %v167 = vshrl.u32 %v166, 7
    %v168 = vsub.s32 0, %v167
    %v169 = vrot.slane %v104, %v168
    %v170 = vmul.f32 %v169, %v159
    %v171 = vlaneseq
    %v172 = vshrl.u32 %v171, 7
    %v173 = vsub.s32 1, %v172
    %v174 = vrot.slane %v104, %v173
    %v175 = vmul.f32 %v174, %v159
    %v176 = vlaneseq
    %v177 = vshrl.u32 %v176, 7
    %v178 = vsub.s32 2, %v177
    %v179 = vrot.slane %v104, %v178
    %v180 = vmul.f32 %v179, %v159
    %v181 = vlaneseq
    %v182 = vshrl.u32 %v181, 7
    %v183 = vsub.s32 3, %v182
    %v184 = vrot.slane %v104, %v183
    %v185 = vmul.f32 %v184, %v159
    %v186 = vpack.c.bf16 %v175, %v170
    %v187 = vpack.c.bf16 %v185, %v180
    %v190 = vunpack.c.l.b16 %v164
    %v191 = vunpack.c.l.b16 %v165
    %v192 = vpack.c.b16 %v191, %v190
    %vm193 = vcmask 261120
    %v195 = vsel %vm193, %v192, 0
    %197 = vmatprep.subr.bf16.mxu0 0
    %198 = vmatpush1.bf16.msra.mxu0 %v186
    %199 = vmatprep.subr.bf16.mxu0 0
    %200 = vmatpush1.bf16.msra.mxu0 %v187
    %201 = vmatprep.subr.bf16.mxu0 0
    %202 = vmatpush1.bf16.msra.mxu0 0
    %203 = vmatprep.subr.bf16.mxu0 0
    %204 = vmatpush1.bf16.msra.mxu0 0
    %205 = vmatprep.subr.bf16.mxu0 0
    %206 = vmatpush1.bf16.msra.mxu0 0
    %207 = vmatprep.subr.bf16.mxu0 0
    %208 = vmatpush1.bf16.msra.mxu0 0
    %209 = vmatprep.subr.bf16.mxu0 0
    %210 = vmatpush1.bf16.msra.mxu0 0
    %211 = vmatprep.subr.bf16.mxu0 0
    %212 = vmatpush1.bf16.msra.mxu0 0
    %213 = vmatprep.subr.bf16.mxu0 0
    %214 = vmatpush1.bf16.msra.mxu0 0
    %215 = vmatprep.subr.bf16.mxu0 0
    %216 = vmatpush1.bf16.msra.mxu0 0
    %217 = vmatprep.subr.bf16.mxu0 0
    %218 = vmatpush1.bf16.msra.mxu0 0
    %219 = vmatprep.subr.bf16.mxu0 0
    %220 = vmatpush1.bf16.msra.mxu0 0
    %221 = vmatprep.subr.bf16.mxu0 0
    %222 = vmatpush1.bf16.msra.mxu0 0
    %223 = vmatprep.subr.bf16.mxu0 0
    %224 = vmatpush1.bf16.msra.mxu0 0
    %225 = vmatprep.subr.bf16.mxu0 0
    %226 = vmatpush1.bf16.msra.mxu0 0
    %227 = vmatprep.subr.bf16.mxu0 0
    %228 = vmatpush1.bf16.msra.mxu0 0
    %229 = vmatprep.mubr.bf16.mxu0 0
    %230 = vmatmul.mubr.bf16.gmra.mrb[0].mxu0 %v195
    %v231 = vpop.f32.mrb[0].mxu0
    %v232 = vadd.f32 0.0, %v231
    %v233 = vpop.f32.mrb[0].mxu0
    %v234 = vpop.f32.mrb[0].mxu0
    %v235 = vadd.f32 0.0, %v234
    %v236 = vpop.f32.mrb[0].mxu0
    %237 = vdwg.mxu0
    %v238 = vld [vmem:[%s12] sm:$0xf]
    %v239 = vmul.f32 %v169, 0.0
    %v240 = vmul.f32 %v174, 0.0
    %v241 = vmul.f32 %v179, 0.0
    %v242 = vmul.f32 %v184, 0.0
    %v243 = vpack.c.bf16 %v240, %v239
    %v244 = vpack.c.bf16 %v242, %v241
    %v246 = vsel %vm193, %v238, 0
    %248 = vmatprep.subr.bf16.mxu0 0
    %249 = vmatpush1.bf16.msra.mxu0 %v243
    %250 = vmatprep.subr.bf16.mxu0 0
    %251 = vmatpush1.bf16.msra.mxu0 %v244
    %252 = vmatprep.subr.bf16.mxu0 0
    %253 = vmatpush1.bf16.msra.mxu0 0
    %254 = vmatprep.subr.bf16.mxu0 0
    %255 = vmatpush1.bf16.msra.mxu0 0
    %256 = vmatprep.subr.bf16.mxu0 0
    %257 = vmatpush1.bf16.msra.mxu0 0
    %258 = vmatprep.subr.bf16.mxu0 0
    %259 = vmatpush1.bf16.msra.mxu0 0
    %260 = vmatprep.subr.bf16.mxu0 0
    %261 = vmatpush1.bf16.msra.mxu0 0
    %262 = vmatprep.subr.bf16.mxu0 0
    %263 = vmatpush1.bf16.msra.mxu0 0
    %264 = vmatprep.subr.bf16.mxu0 0
    %265 = vmatpush1.bf16.msra.mxu0 0
    %266 = vmatprep.subr.bf16.mxu0 0
    %267 = vmatpush1.bf16.msra.mxu0 0
    %268 = vmatprep.subr.bf16.mxu0 0
    %269 = vmatpush1.bf16.msra.mxu0 0
    %270 = vmatprep.subr.bf16.mxu0 0
    %271 = vmatpush1.bf16.msra.mxu0 0
    %272 = vmatprep.subr.bf16.mxu0 0
    %273 = vmatpush1.bf16.msra.mxu0 0
    %274 = vmatprep.subr.bf16.mxu0 0
    %275 = vmatpush1.bf16.msra.mxu0 0
    %276 = vmatprep.subr.bf16.mxu0 0
    %277 = vmatpush1.bf16.msra.mxu0 0
    %278 = vmatprep.subr.bf16.mxu0 0
    %279 = vmatpush1.bf16.msra.mxu0 0
    %280 = vmatprep.mubr.bf16.mxu0 0
    %281 = vmatmul.mubr.bf16.gmra.mrb[0].mxu0 %v246
    %v282 = vpop.f32.mrb[0].mxu0
    %v283 = vadd.f32 0.0, %v282
    %v284 = vpop.f32.mrb[0].mxu0
    %v285 = vpop.f32.mrb[0].mxu0
    %v286 = vpop.f32.mrb[0].mxu0
    %287 = vdwg.mxu0
    %v288 = vld [vmem:[%s6] sm:$0xf]
    %v289 = vld [vmem:[%s6 + $0x4] sm:$0xf]
    %v290 = vld [vmem:[%s6 + $0x8] sm:$0xf]
    %v291 = vld [vmem:[%s6 + $0xc] sm:$0xf]
    %v292 = vpack.c.bf16 0.0, %v159
    %v293 = vpack.c.bf16 0.0, 0.0
    %v298 = vunpack.c.l.b16 %v288
    %v299 = vunpack.c.l.b16 %v289
    %v300 = vunpack.c.l.b16 %v290
    %v301 = vunpack.c.l.b16 %v291
    %v302 = vpack.c.b16 %v299, %v298
    %v303 = vpack.c.b16 %v301, %v300
    %v305 = vsel %vm193, %v302, 0
    %v308 = vsel %vm193, %v303, 0
    %310 = vmatprep.subr.bf16.mxu0 0
    %311 = vmatpush1.bf16.msra.mxu0 %v292
    %312 = vmatprep.subr.bf16.mxu0 0
    %313 = vmatpush1.bf16.msra.mxu0 %v293
    %314 = vmatprep.subr.bf16.mxu0 0
    %315 = vmatpush1.bf16.msra.mxu0 0
    %316 = vmatprep.subr.bf16.mxu0 0
    %317 = vmatpush1.bf16.msra.mxu0 0
    %318 = vmatprep.subr.bf16.mxu0 0
    %319 = vmatpush1.bf16.msra.mxu0 0
    %320 = vmatprep.subr.bf16.mxu0 0
    %321 = vmatpush1.bf16.msra.mxu0 0
    %322 = vmatprep.subr.bf16.mxu0 0
    %323 = vmatpush1.bf16.msra.mxu0 0
    %324 = vmatprep.subr.bf16.mxu0 0
    %325 = vmatpush1.bf16.msra.mxu0 0
    %326 = vmatprep.subr.bf16.mxu0 0
    %327 = vmatpush1.bf16.msra.mxu0 0
    %328 = vmatprep.subr.bf16.mxu0 0
    %329 = vmatpush1.bf16.msra.mxu0 0
    %330 = vmatprep.subr.bf16.mxu0 0
    %331 = vmatpush1.bf16.msra.mxu0 0
    %332 = vmatprep.subr.bf16.mxu0 0
    %333 = vmatpush1.bf16.msra.mxu0 0
    %334 = vmatprep.subr.bf16.mxu0 0
    %335 = vmatpush1.bf16.msra.mxu0 0
    %336 = vmatprep.subr.bf16.mxu0 0
    %337 = vmatpush1.bf16.msra.mxu0 0
    %338 = vmatprep.subr.bf16.mxu0 0
    %339 = vmatpush1.bf16.msra.mxu0 0
    %340 = vmatprep.subr.bf16.mxu0 0
    %341 = vmatpush1.bf16.msra.mxu0 0
    %342 = vmatprep.mubr.bf16.mxu0 0
    %343 = vmatmul.mubr.bf16.gmra.mrb[0].mxu0 %v305
    %v344 = vpop.f32.mrb[0].mxu0
    %v345 = vadd.f32 0.0, %v344
    %v346 = vpop.f32.mrb[0].mxu0
    %v347 = vpop.f32.mrb[0].mxu0
    %v348 = vadd.f32 0.0, %v347
    %v349 = vpop.f32.mrb[0].mxu0
    %350 = vmatprep.mubr.bf16.mxu0 0
    %351 = vmatmul.mubr.bf16.gmra.mrb[0].mxu0 %v308
    %v352 = vpop.f32.mrb[0].mxu0
    %v353 = vadd.f32 0.0, %v352
    %v354 = vpop.f32.mrb[0].mxu0
    %v355 = vpop.f32.mrb[0].mxu0
    %v356 = vadd.f32 0.0, %v355
    %v357 = vpop.f32.mrb[0].mxu0
    %358 = vdwg.mxu0
    %v359 = vpack.c.bf16 %v348, %v345
    %v360 = vpack.c.bf16 %v356, %v353
    %v363 = vunpack.c.l.b16 %v105
    %v364 = vunpack.c.l.b16 %v106
    %v365 = vpack.c.b16 %v364, %v363
    %vm367 = vcmask 130048
    %v369 = vsel %vm367, %v359, 0
    %v372 = vsel %vm367, %v360, 0
    %374 = vmatprep.subr.bf16.mxu0 0
    %375 = vmatpush1.bf16.msra.mxu0 %v365
    %376 = vmatprep.subr.bf16.mxu0 0
    %377 = vmatpush1.bf16.msra.mxu0 0
    %378 = vmatprep.subr.bf16.mxu0 0
    %379 = vmatpush1.bf16.msra.mxu0 0
    %380 = vmatprep.subr.bf16.mxu0 0
    %381 = vmatpush1.bf16.msra.mxu0 0
    %382 = vmatprep.subr.bf16.mxu0 0
    %383 = vmatpush1.bf16.msra.mxu0 0
    %384 = vmatprep.subr.bf16.mxu0 0
    %385 = vmatpush1.bf16.msra.mxu0 0
    %386 = vmatprep.subr.bf16.mxu0 0
    %387 = vmatpush1.bf16.msra.mxu0 0
    %388 = vmatprep.subr.bf16.mxu0 0
    %389 = vmatpush1.bf16.msra.mxu0 0
    %390 = vmatprep.subr.bf16.mxu0 0
    %391 = vmatpush1.bf16.msra.mxu0 0
    %392 = vmatprep.subr.bf16.mxu0 0
    %393 = vmatpush1.bf16.msra.mxu0 0
    %394 = vmatprep.subr.bf16.mxu0 0
    %395 = vmatpush1.bf16.msra.mxu0 0
    %396 = vmatprep.subr.bf16.mxu0 0
    %397 = vmatpush1.bf16.msra.mxu0 0
    %398 = vmatprep.subr.bf16.mxu0 0
    %399 = vmatpush1.bf16.msra.mxu0 0
    %400 = vmatprep.subr.bf16.mxu0 0
    %401 = vmatpush1.bf16.msra.mxu0 0
    %402 = vmatprep.subr.bf16.mxu0 0
    %403 = vmatpush1.bf16.msra.mxu0 0
    %404 = vmatprep.subr.bf16.mxu0 0
    %405 = vmatpush1.bf16.msra.mxu0 0
    %406 = vmatprep.mubr.bf16.mxu0 0
    %407 = vmatmul.mubr.bf16.gmra.mrb[0].mxu0 %v369
    %v408 = vpop.f32.mrb[0].mxu0
    %v409 = vadd.f32 0.0, %v408
    %v410 = vpop.f32.mrb[0].mxu0
    %v411 = vpop.f32.mrb[0].mxu0
    %v412 = vadd.f32 0.0, %v411
    %v413 = vpop.f32.mrb[0].mxu0
    %414 = vmatprep.mubr.bf16.mxu0 0
    %415 = vmatmul.mubr.bf16.gmra.mrb[0].mxu0 %v372
    %v416 = vpop.f32.mrb[0].mxu0
    %v417 = vadd.f32 0.0, %v416
    %v418 = vpop.f32.mrb[0].mxu0
    %v419 = vpop.f32.mrb[0].mxu0
    %v420 = vadd.f32 0.0, %v419
    %v421 = vpop.f32.mrb[0].mxu0
    %422 = vdwg.mxu0
    %v423 = vld [vmem:[%s7] sm:$0xf]
    %v424 = vld [vmem:[%s7 + $0x4] sm:$0xf]
    %v425 = vpack.c.bf16 %v93, %v93
    %v428 = vunpack.c.l.b16 %v423
    %v429 = vunpack.c.l.b16 %v424
    %v430 = vpack.c.b16 %v429, %v428
    %vm431 = vcmask 64512
    %v433 = vsel %vm431, %v430, 0
    %vm435 = vcmask 1043456
    %v437 = vsel %vm435, %v425, 0
    %439 = vmatprep.subr.bf16.mxu0 0
    %440 = vmatpush1.bf16.msra.mxu0 %v437
    %441 = vmatprep.subr.bf16.mxu0 0
    %442 = vmatpush1.bf16.msra.mxu0 0
    %443 = vmatprep.subr.bf16.mxu0 0
    %444 = vmatpush1.bf16.msra.mxu0 0
    %445 = vmatprep.subr.bf16.mxu0 0
    %446 = vmatpush1.bf16.msra.mxu0 0
    %447 = vmatprep.subr.bf16.mxu0 0
    %448 = vmatpush1.bf16.msra.mxu0 0
    %449 = vmatprep.subr.bf16.mxu0 0
    %450 = vmatpush1.bf16.msra.mxu0 0
    %451 = vmatprep.subr.bf16.mxu0 0
    %452 = vmatpush1.bf16.msra.mxu0 0
    %453 = vmatprep.subr.bf16.mxu0 0
    %454 = vmatpush1.bf16.msra.mxu0 0
    %455 = vmatprep.subr.bf16.mxu0 0
    %456 = vmatpush1.bf16.msra.mxu0 0
    %457 = vmatprep.subr.bf16.mxu0 0
    %458 = vmatpush1.bf16.msra.mxu0 0
    %459 = vmatprep.subr.bf16.mxu0 0
    %460 = vmatpush1.bf16.msra.mxu0 0
    %461 = vmatprep.subr.bf16.mxu0 0
    %462 = vmatpush1.bf16.msra.mxu0 0
    %463 = vmatprep.subr.bf16.mxu0 0
    %464 = vmatpush1.bf16.msra.mxu0 0
    %465 = vmatprep.subr.bf16.mxu0 0
    %466 = vmatpush1.bf16.msra.mxu0 0
    %467 = vmatprep.subr.bf16.mxu0 0
    %468 = vmatpush1.bf16.msra.mxu0 0
    %469 = vmatprep.subr.bf16.mxu0 0
    %470 = vmatpush1.bf16.msra.mxu0 0
    %471 = vmatprep.mubr.bf16.mxu0 0
    %472 = vmatmul.mubr.bf16.gmra.mrb[0].mxu0 %v433
    %v473 = vpop.f32.mrb[0].mxu0
    %v474 = vadd.f32 0.0, %v473
    %v475 = vpop.f32.mrb[0].mxu0
    %v476 = vpop.f32.mrb[0].mxu0
    %v477 = vadd.f32 0.0, %v476
    %v478 = vpop.f32.mrb[0].mxu0
    %479 = vdwg.mxu0
    %v480 = vmax.f32 %v474, 0.0
    %v481 = vmax.f32 %v477, 0.0
    %v482 = vand.u32 2147483647, %v474
    %v483 = vand.u32 2147483647, %v477
    %v484 = vsub.f32 0.0, %v482
    %v485 = vsub.f32 0.0, %v483
    %v486 = vmul.f32 %v484, 1.442695
    %v487 = vpow.pop %v486
    %v488 = vmul.f32 %v485, 1.442695
    %v489 = vpow.pop %v488
    %v490 = vadd.f32 %v487, 1.0
    %v491 = vadd.f32 %v489, 1.0
    %v492 = vlog2.pop %v490
    %v493 = vmul.f32 %v492, 0.6931472
    %v494 = vlog2.pop %v491
    %v495 = vmul.f32 %v494, 0.6931472
    %v496 = vadd.f32 %v480, %v493
    %v497 = vadd.f32 %v481, %v495
    %v498 = vsub.f32 %v496, 0.6931472
    %v499 = vsub.f32 %v497, 0.6931472
    %v500 = vld [vmem:[%s8] sm:$0xf]
    %v501 = vld [vmem:[%s8 + $0x4] sm:$0xf]
    %v502 = vld [vmem:[%s8 + $0x8] sm:$0xf]
    %v503 = vld [vmem:[%s8 + $0xc] sm:$0xf]
    %v504 = vld [vmem:[%s8 + $0x10] sm:$0xf]
    %v505 = vpack.c.bf16 %v499, %v498
    %v511 = vunpack.c.l.b16 %v500
    %v512 = vunpack.c.l.b16 %v501
    %v513 = vunpack.c.l.b16 %v502
    %v514 = vunpack.c.l.b16 %v503
    %v515 = vunpack.c.l.b16 %v504
    %v516 = vpack.c.b16 %v512, %v511
    %v517 = vpack.c.b16 %v514, %v513
    %v518 = vpack.c.b16 %v515, %v515
    %v520 = vsel %vm367, %v516, 0
    %v523 = vsel %vm367, %v517, 0
    %v526 = vsel %vm367, %v518, 0
    %528 = vmatprep.subr.bf16.mxu0 0
    %529 = vmatpush1.bf16.msra.mxu0 %v505
    %530 = vmatprep.subr.bf16.mxu0 0
    %531 = vmatpush1.bf16.msra.mxu0 0
    %532 = vmatprep.subr.bf16.mxu0 0
    %533 = vmatpush1.bf16.msra.mxu0 0
    %534 = vmatprep.subr.bf16.mxu0 0
    %535 = vmatpush1.bf16.msra.mxu0 0
    %536 = vmatprep.subr.bf16.mxu0 0
    %537 = vmatpush1.bf16.msra.mxu0 0
    %538 = vmatprep.subr.bf16.mxu0 0
    %539 = vmatpush1.bf16.msra.mxu0 0
    %540 = vmatprep.subr.bf16.mxu0 0
    %541 = vmatpush1.bf16.msra.mxu0 0
    %542 = vmatprep.subr.bf16.mxu0 0
    %543 = vmatpush1.bf16.msra.mxu0 0
    %544 = vmatprep.subr.bf16.mxu0 0
    %545 = vmatpush1.bf16.msra.mxu0 0
    %546 = vmatprep.subr.bf16.mxu0 0
    %547 = vmatpush1.bf16.msra.mxu0 0
    %548 = vmatprep.subr.bf16.mxu0 0
    %549 = vmatpush1.bf16.msra.mxu0 0
    %550 = vmatprep.subr.bf16.mxu0 0
    %551 = vmatpush1.bf16.msra.mxu0 0
    %552 = vmatprep.subr.bf16.mxu0 0
    %553 = vmatpush1.bf16.msra.mxu0 0
    %554 = vmatprep.subr.bf16.mxu0 0
    %555 = vmatpush1.bf16.msra.mxu0 0
    %556 = vmatprep.subr.bf16.mxu0 0
    %557 = vmatpush1.bf16.msra.mxu0 0
    %558 = vmatprep.subr.bf16.mxu0 0
    %559 = vmatpush1.bf16.msra.mxu0 0
    %560 = vmatprep.mubr.bf16.mxu0 0
    %561 = vmatmul.mubr.bf16.gmra.mrb[0].mxu0 %v520
    %v562 = vpop.f32.mrb[0].mxu0
    %v563 = vadd.f32 0.0, %v562
    %v564 = vpop.f32.mrb[0].mxu0
    %v565 = vpop.f32.mrb[0].mxu0
    %v566 = vadd.f32 0.0, %v565
    %v567 = vpop.f32.mrb[0].mxu0
    %568 = vmatprep.mubr.bf16.mxu0 0
    %569 = vmatmul.mubr.bf16.gmra.mrb[0].mxu0 %v523
    %v570 = vpop.f32.mrb[0].mxu0
    %v571 = vadd.f32 0.0, %v570
    %v572 = vpop.f32.mrb[0].mxu0
    %v573 = vpop.f32.mrb[0].mxu0
    %v574 = vadd.f32 0.0, %v573
    %v575 = vpop.f32.mrb[0].mxu0
    %576 = vmatprep.mubr.bf16.mxu0 0
    %577 = vmatmul.mubr.bf16.gmra.mrb[0].mxu0 %v526
    %v578 = vpop.f32.mrb[0].mxu0
    %v579 = vadd.f32 0.0, %v578
    %v580 = vpop.f32.mrb[0].mxu0
    %v581 = vpop.f32.mrb[0].mxu0
    %v582 = vpop.f32.mrb[0].mxu0
    %583 = vdwg.mxu0
    %v584 = vmul.f32 %v566, %v409
    %v585 = vmul.f32 %v563, %v409
    %v586 = vlaneseq
    %v587 = vshrl.u32 %v586, 7
    %v588 = vsub.s32 0, %v587
    %v589 = vrot.slane %v95, %v588
    %v590 = vmul.f32 %v412, %v589
    %v591 = vlaneseq
    %v592 = vshrl.u32 %v591, 7
    %v593 = vsub.s32 1, %v592
    %v594 = vrot.slane %v99, %v593
    %v595 = vmul.f32 %v417, %v594
    %v596 = vadd.f32 %v590, %v595
    %v597 = vlaneseq
    %v598 = vshrl.u32 %v597, 7
    %v599 = vsub.s32 2, %v598
    %v600 = vrot.slane %v102, %v599
    %v601 = vmul.f32 %v420, %v600
    %v602 = vadd.f32 %v596, %v601
    %v603 = vmul.f32 %v574, %v602
    %v604 = vmul.f32 %v584, %v589
    %v605 = vmul.f32 %v571, %v412
    %v606 = vmul.f32 %v417, %v600
    %v607 = vmul.f32 %v420, %v594
    %v608 = vsub.f32 %v606, %v607
    %v609 = vmul.f32 %v579, %v608
    %v610 = vmul.f32 %v584, %v594
    %v611 = vmul.f32 %v571, %v417
    %v612 = vmul.f32 %v420, %v589
    %v613 = vmul.f32 %v412, %v600
    %v614 = vsub.f32 %v612, %v613
    %v615 = vmul.f32 %v579, %v614
    %v616 = vmul.f32 %v584, %v600
    %v617 = vmul.f32 %v571, %v420
    %v618 = vmul.f32 %v412, %v594
    %v619 = vmul.f32 %v417, %v589
    %v620 = vsub.f32 %v618, %v619
    %v621 = vmul.f32 %v579, %v620
    %v622 = vpack.c.bf16 %v603, %v585
    %v623 = vpack.c.bf16 %v605, %v604
    %v624 = vpack.c.bf16 %v610, %v609
    %v625 = vpack.c.bf16 %v615, %v611
    %v626 = vpack.c.bf16 %v617, %v616
    %v627 = vpack.c.bf16 %v621, %v621
    %v636 = vunpack.c.l.b16 %v107
    %v637 = vunpack.c.l.b16 %v108
    %v638 = vunpack.c.l.b16 %v109
    %v639 = vunpack.c.l.b16 %v110
    %v640 = vunpack.c.l.b16 %v111
    %v641 = vunpack.c.l.b16 %v112
    %v642 = vunpack.c.l.b16 %v113
    %v643 = vunpack.c.l.b16 %v114
    %v644 = vpack.c.b16 %v637, %v636
    %v645 = vpack.c.b16 %v639, %v638
    %v646 = vpack.c.b16 %v641, %v640
    %v647 = vpack.c.b16 %v643, %v642
    %vm652 = vcmask 523264
    %v654 = vsel %vm652, %v622, 0
    %v657 = vsel %vm652, %v623, 0
    %v660 = vsel %vm652, %v624, 0
    %v663 = vsel %vm652, %v625, 0
    %v666 = vsel %vm652, %v626, 0
    %v669 = vsel %vm652, %v627, 0
    %671 = vmatprep.subr.bf16.mxu0 0
    %672 = vmatpush1.bf16.msra.mxu0 %v644
    %673 = vmatprep.subr.bf16.mxu0 0
    %674 = vmatpush1.bf16.msra.mxu0 %v645
    %675 = vmatprep.subr.bf16.mxu0 0
    %676 = vmatpush1.bf16.msra.mxu0 %v646
    %677 = vmatprep.subr.bf16.mxu0 0
    %678 = vmatpush1.bf16.msra.mxu0 %v647
    %679 = vmatprep.subr.bf16.mxu0 0
    %680 = vmatpush1.bf16.msra.mxu0 0
    %681 = vmatprep.subr.bf16.mxu0 0
    %682 = vmatpush1.bf16.msra.mxu0 0
    %683 = vmatprep.subr.bf16.mxu0 0
    %684 = vmatpush1.bf16.msra.mxu0 0
    %685 = vmatprep.subr.bf16.mxu0 0
    %686 = vmatpush1.bf16.msra.mxu0 0
    %687 = vmatprep.subr.bf16.mxu0 0
    %688 = vmatpush1.bf16.msra.mxu0 0
    %689 = vmatprep.subr.bf16.mxu0 0
    %690 = vmatpush1.bf16.msra.mxu0 0
    %691 = vmatprep.subr.bf16.mxu0 0
    %692 = vmatpush1.bf16.msra.mxu0 0
    %693 = vmatprep.subr.bf16.mxu0 0
    %694 = vmatpush1.bf16.msra.mxu0 0
    %695 = vmatprep.subr.bf16.mxu0 0
    %696 = vmatpush1.bf16.msra.mxu0 0
    %697 = vmatprep.subr.bf16.mxu0 0
    %698 = vmatpush1.bf16.msra.mxu0 0
    %699 = vmatprep.subr.bf16.mxu0 0
    %700 = vmatpush1.bf16.msra.mxu0 0
    %701 = vmatprep.subr.bf16.mxu0 0
    %702 = vmatpush1.bf16.msra.mxu0 0
    %703 = vmatprep.mubr.bf16.mxu0 0
    %704 = vmatmul.mubr.bf16.gmra.mrb[0].mxu0 %v654
    %v705 = vpop.f32.mrb[0].mxu0
    %v706 = vadd.f32 0.0, %v705
    %v707 = vpop.f32.mrb[0].mxu0
    %v708 = vpop.f32.mrb[0].mxu0
    %v709 = vadd.f32 0.0, %v708
    %v710 = vpop.f32.mrb[0].mxu0
    %711 = vmatprep.mubr.bf16.mxu0 0
    %712 = vmatmul.mubr.bf16.gmra.mrb[0].mxu0 %v657
    %v713 = vpop.f32.mrb[0].mxu0
    %v714 = vadd.f32 0.0, %v713
    %v715 = vpop.f32.mrb[0].mxu0
    %v716 = vpop.f32.mrb[0].mxu0
    %v717 = vadd.f32 0.0, %v716
    %v718 = vpop.f32.mrb[0].mxu0
    %719 = vmatprep.mubr.bf16.mxu0 0
    %720 = vmatmul.mubr.bf16.gmra.mrb[0].mxu0 %v660
    %v721 = vpop.f32.mrb[0].mxu0
    %v722 = vadd.f32 0.0, %v721
    %v723 = vpop.f32.mrb[0].mxu0
    %v724 = vpop.f32.mrb[0].mxu0
    %v725 = vadd.f32 0.0, %v724
    %v726 = vpop.f32.mrb[0].mxu0
    %727 = vmatprep.mubr.bf16.mxu0 0
    %728 = vmatmul.mubr.bf16.gmra.mrb[0].mxu0 %v663
    %v729 = vpop.f32.mrb[0].mxu0
    %v730 = vadd.f32 0.0, %v729
    %v731 = vpop.f32.mrb[0].mxu0
    %v732 = vpop.f32.mrb[0].mxu0
    %v733 = vadd.f32 0.0, %v732
    %v734 = vpop.f32.mrb[0].mxu0
    %735 = vmatprep.mubr.bf16.mxu0 0
    %736 = vmatmul.mubr.bf16.gmra.mrb[0].mxu0 %v666
    %v737 = vpop.f32.mrb[0].mxu0
    %v738 = vadd.f32 0.0, %v737
    %v739 = vpop.f32.mrb[0].mxu0
    %v740 = vpop.f32.mrb[0].mxu0
    %v741 = vadd.f32 0.0, %v740
    %v742 = vpop.f32.mrb[0].mxu0
    %743 = vmatprep.mubr.bf16.mxu0 0
    %744 = vmatmul.mubr.bf16.gmra.mrb[0].mxu0 %v669
    %v745 = vpop.f32.mrb[0].mxu0
    %v746 = vadd.f32 0.0, %v745
    %v747 = vpop.f32.mrb[0].mxu0
    %v748 = vpop.f32.mrb[0].mxu0
    %v749 = vpop.f32.mrb[0].mxu0
    %750 = vdwg.mxu0
    %v751 = vld [vmem:[%s9] sm:$0xf]
    %v752 = vld [vmem:[%s9 + $0x4] sm:$0xf]
    %v753 = vpack.c.bf16 %v709, %v706
    %v756 = vunpack.c.l.b16 %v751
    %v757 = vunpack.c.l.b16 %v752
    %v758 = vpack.c.b16 %v757, %v756
    %v760 = vsel %vm367, %v758, 0
    %762 = vmatprep.subr.bf16.mxu0 0
    %763 = vmatpush1.bf16.msra.mxu0 %v753
    %764 = vmatprep.subr.bf16.mxu0 0
    %765 = vmatpush1.bf16.msra.mxu0 0
    %766 = vmatprep.subr.bf16.mxu0 0
    %767 = vmatpush1.bf16.msra.mxu0 0
    %768 = vmatprep.subr.bf16.mxu0 0
    %769 = vmatpush1.bf16.msra.mxu0 0
    %770 = vmatprep.subr.bf16.mxu0 0
    %771 = vmatpush1.bf16.msra.mxu0 0
    %772 = vmatprep.subr.bf16.mxu0 0
    %773 = vmatpush1.bf16.msra.mxu0 0
    %774 = vmatprep.subr.bf16.mxu0 0
    %775 = vmatpush1.bf16.msra.mxu0 0
    %776 = vmatprep.subr.bf16.mxu0 0
    %777 = vmatpush1.bf16.msra.mxu0 0
    %778 = vmatprep.subr.bf16.mxu0 0
    %779 = vmatpush1.bf16.msra.mxu0 0
    %780 = vmatprep.subr.bf16.mxu0 0
    %781 = vmatpush1.bf16.msra.mxu0 0
    %782 = vmatprep.subr.bf16.mxu0 0
    %783 = vmatpush1.bf16.msra.mxu0 0
    %784 = vmatprep.subr.bf16.mxu0 0
    %785 = vmatpush1.bf16.msra.mxu0 0
    %786 = vmatprep.subr.bf16.mxu0 0
    %787 = vmatpush1.bf16.msra.mxu0 0
    %788 = vmatprep.subr.bf16.mxu0 0
    %789 = vmatpush1.bf16.msra.mxu0 0
    %790 = vmatprep.subr.bf16.mxu0 0
    %791 = vmatpush1.bf16.msra.mxu0 0
    %792 = vmatprep.subr.bf16.mxu0 0
    %793 = vmatpush1.bf16.msra.mxu0 0
    %794 = vmatprep.mubr.bf16.mxu0 0
    %795 = vmatmul.mubr.bf16.gmra.mrb[0].mxu0 %v760
    %v796 = vpop.f32.mrb[0].mxu0
    %v797 = vadd.f32 %v232, %v796
    %v798 = vpop.f32.mrb[0].mxu0
    %v799 = vpop.f32.mrb[0].mxu0
    %v800 = vadd.f32 %v235, %v799
    %v801 = vpop.f32.mrb[0].mxu0
    %802 = vdwg.mxu0
    %v803 = vld [vmem:[%s10] sm:$0xf]
    %v804 = vpack.c.bf16 %v717, %v714
    %v805 = vpack.c.bf16 %v722, %v722
    %vm806 = vcmask 195584
    %v808 = vsel %vm806, %v803, 0
    %v811 = vsel %vm435, %v805, 0
    %813 = vmatprep.subr.bf16.mxu0 0
    %814 = vmatpush1.bf16.msra.mxu0 %v804
    %815 = vmatprep.subr.bf16.mxu0 0
    %816 = vmatpush1.bf16.msra.mxu0 %v811
    %817 = vmatprep.subr.bf16.mxu0 0
    %818 = vmatpush1.bf16.msra.mxu0 0
    %819 = vmatprep.subr.bf16.mxu0 0
    %820 = vmatpush1.bf16.msra.mxu0 0
    %821 = vmatprep.subr.bf16.mxu0 0
    %822 = vmatpush1.bf16.msra.mxu0 0
    %823 = vmatprep.subr.bf16.mxu0 0
    %824 = vmatpush1.bf16.msra.mxu0 0
    %825 = vmatprep.subr.bf16.mxu0 0
    %826 = vmatpush1.bf16.msra.mxu0 0
    %827 = vmatprep.subr.bf16.mxu0 0
    %828 = vmatpush1.bf16.msra.mxu0 0
    %829 = vmatprep.subr.bf16.mxu0 0
    %830 = vmatpush1.bf16.msra.mxu0 0
    %831 = vmatprep.subr.bf16.mxu0 0
    %832 = vmatpush1.bf16.msra.mxu0 0
    %833 = vmatprep.subr.bf16.mxu0 0
    %834 = vmatpush1.bf16.msra.mxu0 0
    %835 = vmatprep.subr.bf16.mxu0 0
    %836 = vmatpush1.bf16.msra.mxu0 0
    %837 = vmatprep.subr.bf16.mxu0 0
    %838 = vmatpush1.bf16.msra.mxu0 0
    %839 = vmatprep.subr.bf16.mxu0 0
    %840 = vmatpush1.bf16.msra.mxu0 0
    %841 = vmatprep.subr.bf16.mxu0 0
    %842 = vmatpush1.bf16.msra.mxu0 0
    %843 = vmatprep.subr.bf16.mxu0 0
    %844 = vmatpush1.bf16.msra.mxu0 0
    %845 = vmatprep.mubr.bf16.mxu0 0
    %846 = vmatmul.mubr.bf16.gmra.mrb[0].mxu0 %v808
    %v847 = vpop.f32.mrb[0].mxu0
    %v848 = vadd.f32 %v283, %v847
    %v849 = vpop.f32.mrb[0].mxu0
    %v850 = vpop.f32.mrb[0].mxu0
    %v851 = vpop.f32.mrb[0].mxu0
    %852 = vdwg.mxu0
    %v853 = vpack.c.bf16 %v730, %v725
    %v854 = vpack.c.bf16 %v733, %v733
    %v856 = vsel %vm435, %v854, 0
    %858 = vmatprep.subr.bf16.mxu0 0
    %859 = vmatpush1.bf16.msra.mxu0 %v853
    %860 = vmatprep.subr.bf16.mxu0 0
    %861 = vmatpush1.bf16.msra.mxu0 %v856
    %862 = vmatprep.subr.bf16.mxu0 0
    %863 = vmatpush1.bf16.msra.mxu0 0
    %864 = vmatprep.subr.bf16.mxu0 0
    %865 = vmatpush1.bf16.msra.mxu0 0
    %866 = vmatprep.subr.bf16.mxu0 0
    %867 = vmatpush1.bf16.msra.mxu0 0
    %868 = vmatprep.subr.bf16.mxu0 0
    %869 = vmatpush1.bf16.msra.mxu0 0
    %870 = vmatprep.subr.bf16.mxu0 0
    %871 = vmatpush1.bf16.msra.mxu0 0
    %872 = vmatprep.subr.bf16.mxu0 0
    %873 = vmatpush1.bf16.msra.mxu0 0
    %874 = vmatprep.subr.bf16.mxu0 0
    %875 = vmatpush1.bf16.msra.mxu0 0
    %876 = vmatprep.subr.bf16.mxu0 0
    %877 = vmatpush1.bf16.msra.mxu0 0
    %878 = vmatprep.subr.bf16.mxu0 0
    %879 = vmatpush1.bf16.msra.mxu0 0
    %880 = vmatprep.subr.bf16.mxu0 0
    %881 = vmatpush1.bf16.msra.mxu0 0
    %882 = vmatprep.subr.bf16.mxu0 0
    %883 = vmatpush1.bf16.msra.mxu0 0
    %884 = vmatprep.subr.bf16.mxu0 0
    %885 = vmatpush1.bf16.msra.mxu0 0
    %886 = vmatprep.subr.bf16.mxu0 0
    %887 = vmatpush1.bf16.msra.mxu0 0
    %888 = vmatprep.subr.bf16.mxu0 0
    %889 = vmatpush1.bf16.msra.mxu0 0
    %890 = vmatprep.mubr.bf16.mxu0 0
    %891 = vmatmul.mubr.bf16.gmra.mrb[0].mxu0 %v808
    %v892 = vpop.f32.mrb[0].mxu0
    %v893 = vadd.f32 %v283, %v892
    %v894 = vpop.f32.mrb[0].mxu0
    %v895 = vpop.f32.mrb[0].mxu0
    %v896 = vpop.f32.mrb[0].mxu0
    %897 = vdwg.mxu0
    %v898 = vpack.c.bf16 %v741, %v738
    %v899 = vpack.c.bf16 %v746, %v746
    %v901 = vsel %vm435, %v899, 0
    %903 = vmatprep.subr.bf16.mxu0 0
    %904 = vmatpush1.bf16.msra.mxu0 %v898
    %905 = vmatprep.subr.bf16.mxu0 0
    %906 = vmatpush1.bf16.msra.mxu0 %v901
    %907 = vmatprep.subr.bf16.mxu0 0
    %908 = vmatpush1.bf16.msra.mxu0 0
    %909 = vmatprep.subr.bf16.mxu0 0
    %910 = vmatpush1.bf16.msra.mxu0 0
    %911 = vmatprep.subr.bf16.mxu0 0
    %912 = vmatpush1.bf16.msra.mxu0 0
    %913 = vmatprep.subr.bf16.mxu0 0
    %914 = vmatpush1.bf16.msra.mxu0 0
    %915 = vmatprep.subr.bf16.mxu0 0
    %916 = vmatpush1.bf16.msra.mxu0 0
    %917 = vmatprep.subr.bf16.mxu0 0
    %918 = vmatpush1.bf16.msra.mxu0 0
    %919 = vmatprep.subr.bf16.mxu0 0
    %920 = vmatpush1.bf16.msra.mxu0 0
    %921 = vmatprep.subr.bf16.mxu0 0
    %922 = vmatpush1.bf16.msra.mxu0 0
    %923 = vmatprep.subr.bf16.mxu0 0
    %924 = vmatpush1.bf16.msra.mxu0 0
    %925 = vmatprep.subr.bf16.mxu0 0
    %926 = vmatpush1.bf16.msra.mxu0 0
    %927 = vmatprep.subr.bf16.mxu0 0
    %928 = vmatpush1.bf16.msra.mxu0 0
    %929 = vmatprep.subr.bf16.mxu0 0
    %930 = vmatpush1.bf16.msra.mxu0 0
    %931 = vmatprep.subr.bf16.mxu0 0
    %932 = vmatpush1.bf16.msra.mxu0 0
    %933 = vmatprep.subr.bf16.mxu0 0
    %934 = vmatpush1.bf16.msra.mxu0 0
    %935 = vmatprep.mubr.bf16.mxu0 0
    %936 = vmatmul.mubr.bf16.gmra.mrb[0].mxu0 %v808
    %v937 = vpop.f32.mrb[0].mxu0
    %v938 = vadd.f32 %v283, %v937
    %v939 = vpop.f32.mrb[0].mxu0
    %v940 = vpop.f32.mrb[0].mxu0
    %v941 = vpop.f32.mrb[0].mxu0
    %942 = vdwg.mxu0
    %v943 = vmax.f32 %v800, 0.0
    %v944 = vand.u32 2147483647, %v800
    %v945 = vsub.f32 0.0, %v944
    %v946 = vmul.f32 %v945, 1.442695
    %v947 = vpow.pop %v946
    %v948 = vadd.f32 %v947, 1.0
    %v949 = vlog2.pop %v948
    %v950 = vmul.f32 %v949, 0.6931472
    %v951 = vadd.f32 %v943, %v950
    %v952 = vsub.f32 %v951, 0.6931472
    %v953 = vmax.f32 %v797, 0.0
    %v954 = vand.u32 2147483647, %v797
    %v955 = vsub.f32 0.0, %v954
    %v956 = vmul.f32 %v955, 1.442695
    %v957 = vpow.pop %v956
    %v958 = vadd.f32 %v957, 1.0
    %v959 = vlog2.pop %v958
    %v960 = vmul.f32 %v959, 0.6931472
    %v961 = vadd.f32 %v953, %v960
    %v962 = vsub.f32 %v961, 0.6931472
    %v963 = vmul.f32 %v848, %v952
    %v964 = vmul.f32 %v893, %v952
    %v965 = vmul.f32 %v938, %v952
    %s966 = scalar_lea.vmem %s11, 8
    %v967 = vld [vmem:[%s966] sm:$0xf]
    %v968 = vld [vmem:[%s966 + $0x4] sm:$0xf]
    %v969 = vmul.f32 %v169, %v962
    %v970 = vmul.f32 %v174, %v962
    %v971 = vmul.f32 %v179, %v962
    %v972 = vmul.f32 %v184, %v962
    %v973 = vpack.c.bf16 %v970, %v969
    %v974 = vpack.c.bf16 %v972, %v971
    %v977 = vunpack.c.l.b16 %v967
    %v978 = vunpack.c.l.b16 %v968
    %v979 = vpack.c.b16 %v978, %v977
    %v981 = vsel %vm193, %v979, 0
    %983 = vmatprep.subr.bf16.mxu0 0
    %984 = vmatpush1.bf16.msra.mxu0 %v973
    %985 = vmatprep.subr.bf16.mxu0 0
    %986 = vmatpush1.bf16.msra.mxu0 %v974
    %987 = vmatprep.subr.bf16.mxu0 0
    %988 = vmatpush1.bf16.msra.mxu0 0
    %989 = vmatprep.subr.bf16.mxu0 0
    %990 = vmatpush1.bf16.msra.mxu0 0
    %991 = vmatprep.subr.bf16.mxu0 0
    %992 = vmatpush1.bf16.msra.mxu0 0
    %993 = vmatprep.subr.bf16.mxu0 0
    %994 = vmatpush1.bf16.msra.mxu0 0
    %995 = vmatprep.subr.bf16.mxu0 0
    %996 = vmatpush1.bf16.msra.mxu0 0
    %997 = vmatprep.subr.bf16.mxu0 0
    %998 = vmatpush1.bf16.msra.mxu0 0
    %999 = vmatprep.subr.bf16.mxu0 0
    %1000 = vmatpush1.bf16.msra.mxu0 0
    %1001 = vmatprep.subr.bf16.mxu0 0
    %1002 = vmatpush1.bf16.msra.mxu0 0
    %1003 = vmatprep.subr.bf16.mxu0 0
    %1004 = vmatpush1.bf16.msra.mxu0 0
    %1005 = vmatprep.subr.bf16.mxu0 0
    %1006 = vmatpush1.bf16.msra.mxu0 0
    %1007 = vmatprep.subr.bf16.mxu0 0
    %1008 = vmatpush1.bf16.msra.mxu0 0
    %1009 = vmatprep.subr.bf16.mxu0 0
    %1010 = vmatpush1.bf16.msra.mxu0 0
    %1011 = vmatprep.subr.bf16.mxu0 0
    %1012 = vmatpush1.bf16.msra.mxu0 0
    %1013 = vmatprep.subr.bf16.mxu0 0
    %1014 = vmatpush1.bf16.msra.mxu0 0
    %1015 = vmatprep.mubr.bf16.mxu0 0
    %1016 = vmatmul.mubr.bf16.gmra.mrb[0].mxu0 %v981
    %v1017 = vpop.f32.mrb[0].mxu0
    %v1018 = vadd.f32 0.0, %v1017
    %v1019 = vpop.f32.mrb[0].mxu0
    %v1020 = vpop.f32.mrb[0].mxu0
    %v1021 = vpop.f32.mrb[0].mxu0
    %1022 = vdwg.mxu0
    %s1023 = scalar_lea.vmem %s6, 16
    %v1024 = vld [vmem:[%s1023] sm:$0xf]
    %v1025 = vld [vmem:[%s1023 + $0x4] sm:$0xf]
    %v1026 = vld [vmem:[%s1023 + $0x8] sm:$0xf]
    %v1027 = vld [vmem:[%s1023 + $0xc] sm:$0xf]
    %v1028 = vpack.c.bf16 %v963, %v962
    %v1029 = vpack.c.bf16 %v965, %v964
    %v1034 = vunpack.c.l.b16 %v1024
    %v1035 = vunpack.c.l.b16 %v1025
    %v1036 = vunpack.c.l.b16 %v1026
    %v1037 = vunpack.c.l.b16 %v1027
    %v1038 = vpack.c.b16 %v1035, %v1034
    %v1039 = vpack.c.b16 %v1037, %v1036
    %v1041 = vsel %vm193, %v1038, 0
    %v1044 = vsel %vm193, %v1039, 0
    %1046 = vmatprep.subr.bf16.mxu0 0
    %1047 = vmatpush1.bf16.msra.mxu0 %v1028
    %1048 = vmatprep.subr.bf16.mxu0 0
    %1049 = vmatpush1.bf16.msra.mxu0 %v1029
    %1050 = vmatprep.subr.bf16.mxu0 0
    %1051 = vmatpush1.bf16.msra.mxu0 0
    %1052 = vmatprep.subr.bf16.mxu0 0
    %1053 = vmatpush1.bf16.msra.mxu0 0
    %1054 = vmatprep.subr.bf16.mxu0 0
    %1055 = vmatpush1.bf16.msra.mxu0 0
    %1056 = vmatprep.subr.bf16.mxu0 0
    %1057 = vmatpush1.bf16.msra.mxu0 0
    %1058 = vmatprep.subr.bf16.mxu0 0
    %1059 = vmatpush1.bf16.msra.mxu0 0
    %1060 = vmatprep.subr.bf16.mxu0 0
    %1061 = vmatpush1.bf16.msra.mxu0 0
    %1062 = vmatprep.subr.bf16.mxu0 0
    %1063 = vmatpush1.bf16.msra.mxu0 0
    %1064 = vmatprep.subr.bf16.mxu0 0
    %1065 = vmatpush1.bf16.msra.mxu0 0
    %1066 = vmatprep.subr.bf16.mxu0 0
    %1067 = vmatpush1.bf16.msra.mxu0 0
    %1068 = vmatprep.subr.bf16.mxu0 0
    %1069 = vmatpush1.bf16.msra.mxu0 0
    %1070 = vmatprep.subr.bf16.mxu0 0
    %1071 = vmatpush1.bf16.msra.mxu0 0
    %1072 = vmatprep.subr.bf16.mxu0 0
    %1073 = vmatpush1.bf16.msra.mxu0 0
    %1074 = vmatprep.subr.bf16.mxu0 0
    %1075 = vmatpush1.bf16.msra.mxu0 0
    %1076 = vmatprep.subr.bf16.mxu0 0
    %1077 = vmatpush1.bf16.msra.mxu0 0
    %1078 = vmatprep.mubr.bf16.mxu0 0
    %1079 = vmatmul.mubr.bf16.gmra.mrb[0].mxu0 %v1041
    %v1080 = vpop.f32.mrb[0].mxu0
    %v1081 = vadd.f32 0.0, %v1080
    %v1082 = vpop.f32.mrb[0].mxu0
    %v1083 = vpop.f32.mrb[0].mxu0
    %v1084 = vadd.f32 0.0, %v1083
    %v1085 = vpop.f32.mrb[0].mxu0
    %1086 = vmatprep.mubr.bf16.mxu0 0
    %1087 = vmatmul.mubr.bf16.gmra.mrb[0].mxu0 %v1044
    %v1088 = vpop.f32.mrb[0].mxu0
    %v1089 = vadd.f32 0.0, %v1088
    %v1090 = vpop.f32.mrb[0].mxu0
    %v1091 = vpop.f32.mrb[0].mxu0
    %v1092 = vadd.f32 0.0, %v1091
    %v1093 = vpop.f32.mrb[0].mxu0
    %1094 = vdwg.mxu0
    %v1095 = vpack.c.bf16 %v1084, %v1081
    %v1096 = vpack.c.bf16 %v1092, %v1089
    %v1098 = vsel %vm367, %v1095, 0
    %v1101 = vsel %vm367, %v1096, 0
    %1103 = vmatprep.subr.bf16.mxu0 0
    %1104 = vmatpush1.bf16.msra.mxu0 %v365
    %1105 = vmatprep.subr.bf16.mxu0 0
    %1106 = vmatpush1.bf16.msra.mxu0 0
    %1107 = vmatprep.subr.bf16.mxu0 0
    %1108 = vmatpush1.bf16.msra.mxu0 0
    %1109 = vmatprep.subr.bf16.mxu0 0
    %1110 = vmatpush1.bf16.msra.mxu0 0
    %1111 = vmatprep.subr.bf16.mxu0 0
    %1112 = vmatpush1.bf16.msra.mxu0 0
    %1113 = vmatprep.subr.bf16.mxu0 0
    %1114 = vmatpush1.bf16.msra.mxu0 0
    %1115 = vmatprep.subr.bf16.mxu0 0
    %1116 = vmatpush1.bf16.msra.mxu0 0
    %1117 = vmatprep.subr.bf16.mxu0 0
    %1118 = vmatpush1.bf16.msra.mxu0 0
    %1119 = vmatprep.subr.bf16.mxu0 0
    %1120 = vmatpush1.bf16.msra.mxu0 0
    %1121 = vmatprep.subr.bf16.mxu0 0
    %1122 = vmatpush1.bf16.msra.mxu0 0
    %1123 = vmatprep.subr.bf16.mxu0 0
    %1124 = vmatpush1.bf16.msra.mxu0 0
    %1125 = vmatprep.subr.bf16.mxu0 0
    %1126 = vmatpush1.bf16.msra.mxu0 0
    %1127 = vmatprep.subr.bf16.mxu0 0
    %1128 = vmatpush1.bf16.msra.mxu0 0
    %1129 = vmatprep.subr.bf16.mxu0 0
    %1130 = vmatpush1.bf16.msra.mxu0 0
    %1131 = vmatprep.subr.bf16.mxu0 0
    %1132 = vmatpush1.bf16.msra.mxu0 0
    %1133 = vmatprep.subr.bf16.mxu0 0
    %1134 = vmatpush1.bf16.msra.mxu0 0
    %1135 = vmatprep.mubr.bf16.mxu0 0
    %1136 = vmatmul.mubr.bf16.gmra.mrb[0].mxu0 %v1098
    %v1137 = vpop.f32.mrb[0].mxu0
    %v1138 = vadd.f32 0.0, %v1137
    %v1139 = vpop.f32.mrb[0].mxu0
    %v1140 = vpop.f32.mrb[0].mxu0
    %v1141 = vadd.f32 0.0, %v1140
    %v1142 = vpop.f32.mrb[0].mxu0
    %1143 = vmatprep.mubr.bf16.mxu0 0
    %1144 = vmatmul.mubr.bf16.gmra.mrb[0].mxu0 %v1101
    %v1145 = vpop.f32.mrb[0].mxu0
    %v1146 = vadd.f32 0.0, %v1145
    %v1147 = vpop.f32.mrb[0].mxu0
    %v1148 = vpop.f32.mrb[0].mxu0
    %v1149 = vadd.f32 0.0, %v1148
    %v1150 = vpop.f32.mrb[0].mxu0
    %1151 = vdwg.mxu0
    %s1152 = scalar_lea.vmem %s7, 8
    %v1153 = vld [vmem:[%s1152] sm:$0xf]
    %v1154 = vld [vmem:[%s1152 + $0x4] sm:$0xf]
    %v1157 = vunpack.c.l.b16 %v1153
    %v1158 = vunpack.c.l.b16 %v1154
    %v1159 = vpack.c.b16 %v1158, %v1157
    %v1161 = vsel %vm431, %v1159, 0
    %1163 = vmatprep.subr.bf16.mxu0 0
    %1164 = vmatpush1.bf16.msra.mxu0 %v437
    %1165 = vmatprep.subr.bf16.mxu0 0
    %1166 = vmatpush1.bf16.msra.mxu0 0
    %1167 = vmatprep.subr.bf16.mxu0 0
    %1168 = vmatpush1.bf16.msra.mxu0 0
    %1169 = vmatprep.subr.bf16.mxu0 0
    %1170 = vmatpush1.bf16.msra.mxu0 0
    %1171 = vmatprep.subr.bf16.mxu0 0
    %1172 = vmatpush1.bf16.msra.mxu0 0
    %1173 = vmatprep.subr.bf16.mxu0 0
    %1174 = vmatpush1.bf16.msra.mxu0 0
    %1175 = vmatprep.subr.bf16.mxu0 0
    %1176 = vmatpush1.bf16.msra.mxu0 0
    %1177 = vmatprep.subr.bf16.mxu0 0
    %1178 = vmatpush1.bf16.msra.mxu0 0
    %1179 = vmatprep.subr.bf16.mxu0 0
    %1180 = vmatpush1.bf16.msra.mxu0 0
    %1181 = vmatprep.subr.bf16.mxu0 0
    %1182 = vmatpush1.bf16.msra.mxu0 0
    %1183 = vmatprep.subr.bf16.mxu0 0
    %1184 = vmatpush1.bf16.msra.mxu0 0
    %1185 = vmatprep.subr.bf16.mxu0 0
    %1186 = vmatpush1.bf16.msra.mxu0 0
    %1187 = vmatprep.subr.bf16.mxu0 0
    %1188 = vmatpush1.bf16.msra.mxu0 0
    %1189 = vmatprep.subr.bf16.mxu0 0
    %1190 = vmatpush1.bf16.msra.mxu0 0
    %1191 = vmatprep.subr.bf16.mxu0 0
    %1192 = vmatpush1.bf16.msra.mxu0 0
    %1193 = vmatprep.subr.bf16.mxu0 0
    %1194 = vmatpush1.bf16.msra.mxu0 0
    %1195 = vmatprep.mubr.bf16.mxu0 0
    %1196 = vmatmul.mubr.bf16.gmra.mrb[0].mxu0 %v1161
    %v1197 = vpop.f32.mrb[0].mxu0
    %v1198 = vadd.f32 0.0, %v1197
    %v1199 = vpop.f32.mrb[0].mxu0
    %v1200 = vpop.f32.mrb[0].mxu0
    %v1201 = vadd.f32 0.0, %v1200
    %v1202 = vpop.f32.mrb[0].mxu0
    %1203 = vdwg.mxu0
    %v1204 = vmax.f32 %v1198, 0.0
    %v1205 = vmax.f32 %v1201, 0.0
    %v1206 = vand.u32 2147483647, %v1198
    %v1207 = vand.u32 2147483647, %v1201
    %v1208 = vsub.f32 0.0, %v1206
    %v1209 = vsub.f32 0.0, %v1207
    %v1210 = vmul.f32 %v1208, 1.442695
    %v1211 = vpow.pop %v1210
    %v1212 = vmul.f32 %v1209, 1.442695
    %v1213 = vpow.pop %v1212
    %v1214 = vadd.f32 %v1211, 1.0
    %v1215 = vadd.f32 %v1213, 1.0
    %v1216 = vlog2.pop %v1214
    %v1217 = vmul.f32 %v1216, 0.6931472
    %v1218 = vlog2.pop %v1215
    %v1219 = vmul.f32 %v1218, 0.6931472
    %v1220 = vadd.f32 %v1204, %v1217
    %v1221 = vadd.f32 %v1205, %v1219
    %v1222 = vsub.f32 %v1220, 0.6931472
    %v1223 = vsub.f32 %v1221, 0.6931472
    %s1224 = scalar_lea.vmem %s8, 20
    %v1225 = vld [vmem:[%s1224] sm:$0xf]
    %v1226 = vld [vmem:[%s1224 + $0x4] sm:$0xf]
    %v1227 = vld [vmem:[%s1224 + $0x8] sm:$0xf]
    %v1228 = vld [vmem:[%s1224 + $0xc] sm:$0xf]
    %v1229 = vld [vmem:[%s1224 + $0x10] sm:$0xf]
    %v1230 = vpack.c.bf16 %v1223, %v1222
    %v1236 = vunpack.c.l.b16 %v1225
    %v1237 = vunpack.c.l.b16 %v1226
    %v1238 = vunpack.c.l.b16 %v1227
    %v1239 = vunpack.c.l.b16 %v1228
    %v1240 = vunpack.c.l.b16 %v1229
    %v1241 = vpack.c.b16 %v1237, %v1236
    %v1242 = vpack.c.b16 %v1239, %v1238
    %v1243 = vpack.c.b16 %v1240, %v1240
    %v1245 = vsel %vm367, %v1241, 0
    %v1248 = vsel %vm367, %v1242, 0
    %v1251 = vsel %vm367, %v1243, 0
    %1253 = vmatprep.subr.bf16.mxu0 0
    %1254 = vmatpush1.bf16.msra.mxu0 %v1230
    %1255 = vmatprep.subr.bf16.mxu0 0
    %1256 = vmatpush1.bf16.msra.mxu0 0
    %1257 = vmatprep.subr.bf16.mxu0 0
    %1258 = vmatpush1.bf16.msra.mxu0 0
    %1259 = vmatprep.subr.bf16.mxu0 0
    %1260 = vmatpush1.bf16.msra.mxu0 0
    %1261 = vmatprep.subr.bf16.mxu0 0
    %1262 = vmatpush1.bf16.msra.mxu0 0
    %1263 = vmatprep.subr.bf16.mxu0 0
    %1264 = vmatpush1.bf16.msra.mxu0 0
    %1265 = vmatprep.subr.bf16.mxu0 0
    %1266 = vmatpush1.bf16.msra.mxu0 0
    %1267 = vmatprep.subr.bf16.mxu0 0
    %1268 = vmatpush1.bf16.msra.mxu0 0
    %1269 = vmatprep.subr.bf16.mxu0 0
    %1270 = vmatpush1.bf16.msra.mxu0 0
    %1271 = vmatprep.subr.bf16.mxu0 0
    %1272 = vmatpush1.bf16.msra.mxu0 0
    %1273 = vmatprep.subr.bf16.mxu0 0
    %1274 = vmatpush1.bf16.msra.mxu0 0
    %1275 = vmatprep.subr.bf16.mxu0 0
    %1276 = vmatpush1.bf16.msra.mxu0 0
    %1277 = vmatprep.subr.bf16.mxu0 0
    %1278 = vmatpush1.bf16.msra.mxu0 0
    %1279 = vmatprep.subr.bf16.mxu0 0
    %1280 = vmatpush1.bf16.msra.mxu0 0
    %1281 = vmatprep.subr.bf16.mxu0 0
    %1282 = vmatpush1.bf16.msra.mxu0 0
    %1283 = vmatprep.subr.bf16.mxu0 0
    %1284 = vmatpush1.bf16.msra.mxu0 0
    %1285 = vmatprep.mubr.bf16.mxu0 0
    %1286 = vmatmul.mubr.bf16.gmra.mrb[0].mxu0 %v1245
    %v1287 = vpop.f32.mrb[0].mxu0
    %v1288 = vadd.f32 0.0, %v1287
    %v1289 = vpop.f32.mrb[0].mxu0
    %v1290 = vpop.f32.mrb[0].mxu0
    %v1291 = vadd.f32 0.0, %v1290
    %v1292 = vpop.f32.mrb[0].mxu0
    %1293 = vmatprep.mubr.bf16.mxu0 0
    %1294 = vmatmul.mubr.bf16.gmra.mrb[0].mxu0 %v1248
    %v1295 = vpop.f32.mrb[0].mxu0
    %v1296 = vadd.f32 0.0, %v1295
    %v1297 = vpop.f32.mrb[0].mxu0
    %v1298 = vpop.f32.mrb[0].mxu0
    %v1299 = vadd.f32 0.0, %v1298
    %v1300 = vpop.f32.mrb[0].mxu0
    %1301 = vmatprep.mubr.bf16.mxu0 0
    %1302 = vmatmul.mubr.bf16.gmra.mrb[0].mxu0 %v1251
    %v1303 = vpop.f32.mrb[0].mxu0
    %v1304 = vadd.f32 0.0, %v1303
    %v1305 = vpop.f32.mrb[0].mxu0
    %v1306 = vpop.f32.mrb[0].mxu0
    %v1307 = vpop.f32.mrb[0].mxu0
    %1308 = vdwg.mxu0
    %v1309 = vmul.f32 %v1291, %v1138
    %v1310 = vmul.f32 %v1288, %v1138
    %v1311 = vmul.f32 %v1141, %v589
    %v1312 = vmul.f32 %v1146, %v594
    %v1313 = vadd.f32 %v1311, %v1312
    %v1314 = vmul.f32 %v1149, %v600
    %v1315 = vadd.f32 %v1313, %v1314
    %v1316 = vmul.f32 %v1299, %v1315
    %v1317 = vmul.f32 %v1309, %v589
    %v1318 = vmul.f32 %v1296, %v1141
    %v1319 = vmul.f32 %v1146, %v600
    %v1320 = vmul.f32 %v1149, %v594
    %v1321 = vsub.f32 %v1319, %v1320
    %v1322 = vmul.f32 %v1304, %v1321
    %v1323 = vmul.f32 %v1309, %v594
    %v1324 = vmul.f32 %v1296, %v1146
    %v1325 = vmul.f32 %v1149, %v589
    %v1326 = vmul.f32 %v1141, %v600
    %v1327 = vsub.f32 %v1325, %v1326
    %v1328 = vmul.f32 %v1304, %v1327
    %v1329 = vmul.f32 %v1309, %v600
    %v1330 = vmul.f32 %v1296, %v1149
    %v1331 = vmul.f32 %v1141, %v594
    %v1332 = vmul.f32 %v1146, %v589
    %v1333 = vsub.f32 %v1331, %v1332
    %v1334 = vmul.f32 %v1304, %v1333
    %v1335 = vpack.c.bf16 %v1316, %v1310
    %v1336 = vpack.c.bf16 %v1318, %v1317
    %v1337 = vpack.c.bf16 %v1323, %v1322
    %v1338 = vpack.c.bf16 %v1328, %v1324
    %v1339 = vpack.c.bf16 %v1330, %v1329
    %v1340 = vpack.c.bf16 %v1334, %v1334
    %v1342 = vsel %vm652, %v1335, 0
    %v1345 = vsel %vm652, %v1336, 0
    %v1348 = vsel %vm652, %v1337, 0
    %v1351 = vsel %vm652, %v1338, 0
    %v1354 = vsel %vm652, %v1339, 0
    %v1357 = vsel %vm652, %v1340, 0
    %1359 = vmatprep.subr.bf16.mxu0 0
    %1360 = vmatpush1.bf16.msra.mxu0 %v644
    %1361 = vmatprep.subr.bf16.mxu0 0
    %1362 = vmatpush1.bf16.msra.mxu0 %v645
    %1363 = vmatprep.subr.bf16.mxu0 0
    %1364 = vmatpush1.bf16.msra.mxu0 %v646
    %1365 = vmatprep.subr.bf16.mxu0 0
    %1366 = vmatpush1.bf16.msra.mxu0 %v647
    %1367 = vmatprep.subr.bf16.mxu0 0
    %1368 = vmatpush1.bf16.msra.mxu0 0
    %1369 = vmatprep.subr.bf16.mxu0 0
    %1370 = vmatpush1.bf16.msra.mxu0 0
    %1371 = vmatprep.subr.bf16.mxu0 0
    %1372 = vmatpush1.bf16.msra.mxu0 0
    %1373 = vmatprep.subr.bf16.mxu0 0
    %1374 = vmatpush1.bf16.msra.mxu0 0
    %1375 = vmatprep.subr.bf16.mxu0 0
    %1376 = vmatpush1.bf16.msra.mxu0 0
    %1377 = vmatprep.subr.bf16.mxu0 0
    %1378 = vmatpush1.bf16.msra.mxu0 0
    %1379 = vmatprep.subr.bf16.mxu0 0
    %1380 = vmatpush1.bf16.msra.mxu0 0
    %1381 = vmatprep.subr.bf16.mxu0 0
    %1382 = vmatpush1.bf16.msra.mxu0 0
    %1383 = vmatprep.subr.bf16.mxu0 0
    %1384 = vmatpush1.bf16.msra.mxu0 0
    %1385 = vmatprep.subr.bf16.mxu0 0
    %1386 = vmatpush1.bf16.msra.mxu0 0
    %1387 = vmatprep.subr.bf16.mxu0 0
    %1388 = vmatpush1.bf16.msra.mxu0 0
    %1389 = vmatprep.subr.bf16.mxu0 0
    %1390 = vmatpush1.bf16.msra.mxu0 0
    %1391 = vmatprep.mubr.bf16.mxu0 0
    %1392 = vmatmul.mubr.bf16.gmra.mrb[0].mxu0 %v1342
    %v1393 = vpop.f32.mrb[0].mxu0
    %v1394 = vadd.f32 0.0, %v1393
    %v1395 = vpop.f32.mrb[0].mxu0
    %v1396 = vpop.f32.mrb[0].mxu0
    %v1397 = vadd.f32 0.0, %v1396
    %v1398 = vpop.f32.mrb[0].mxu0
    %1399 = vmatprep.mubr.bf16.mxu0 0
    %1400 = vmatmul.mubr.bf16.gmra.mrb[0].mxu0 %v1345
    %v1401 = vpop.f32.mrb[0].mxu0
    %v1402 = vpop.f32.mrb[0].mxu0
    %v1403 = vpop.f32.mrb[0].mxu0
    %v1404 = vpop.f32.mrb[0].mxu0
    %1405 = vmatprep.mubr.bf16.mxu0 0
    %1406 = vmatmul.mubr.bf16.gmra.mrb[0].mxu0 %v1348
    %v1407 = vpop.f32.mrb[0].mxu0
    %v1408 = vpop.f32.mrb[0].mxu0
    %v1409 = vpop.f32.mrb[0].mxu0
    %v1410 = vpop.f32.mrb[0].mxu0
    %1411 = vmatprep.mubr.bf16.mxu0 0
    %1412 = vmatmul.mubr.bf16.gmra.mrb[0].mxu0 %v1351
    %v1413 = vpop.f32.mrb[0].mxu0
    %v1414 = vpop.f32.mrb[0].mxu0
    %v1415 = vpop.f32.mrb[0].mxu0
    %v1416 = vpop.f32.mrb[0].mxu0
    %1417 = vmatprep.mubr.bf16.mxu0 0
    %1418 = vmatmul.mubr.bf16.gmra.mrb[0].mxu0 %v1354
    %v1419 = vpop.f32.mrb[0].mxu0
    %v1420 = vpop.f32.mrb[0].mxu0
    %v1421 = vpop.f32.mrb[0].mxu0
    %v1422 = vpop.f32.mrb[0].mxu0
    %1423 = vmatprep.mubr.bf16.mxu0 0
    %1424 = vmatmul.mubr.bf16.gmra.mrb[0].mxu0 %v1357
    %v1425 = vpop.f32.mrb[0].mxu0
    %v1426 = vpop.f32.mrb[0].mxu0
    %v1427 = vpop.f32.mrb[0].mxu0
    %v1428 = vpop.f32.mrb[0].mxu0
    %1429 = vdwg.mxu0
    %s1430 = scalar_lea.vmem %s9, 8
    %v1431 = vld [vmem:[%s1430] sm:$0xf]
    %v1432 = vld [vmem:[%s1430 + $0x4] sm:$0xf]
    %v1433 = vpack.c.bf16 %v1397, %v1394
    %v1436 = vunpack.c.l.b16 %v1431
    %v1437 = vunpack.c.l.b16 %v1432
    %v1438 = vpack.c.b16 %v1437, %v1436
    %v1440 = vsel %vm367, %v1438, 0
    %1442 = vmatprep.subr.bf16.mxu0 0
    %1443 = vmatpush1.bf16.msra.mxu0 %v1433
    %1444 = vmatprep.subr.bf16.mxu0 0
    %1445 = vmatpush1.bf16.msra.mxu0 0
    %1446 = vmatprep.subr.bf16.mxu0 0
    %1447 = vmatpush1.bf16.msra.mxu0 0
    %1448 = vmatprep.subr.bf16.mxu0 0
    %1449 = vmatpush1.bf16.msra.mxu0 0
    %1450 = vmatprep.subr.bf16.mxu0 0
    %1451 = vmatpush1.bf16.msra.mxu0 0
    %1452 = vmatprep.subr.bf16.mxu0 0
    %1453 = vmatpush1.bf16.msra.mxu0 0
    %1454 = vmatprep.subr.bf16.mxu0 0
    %1455 = vmatpush1.bf16.msra.mxu0 0
    %1456 = vmatprep.subr.bf16.mxu0 0
    %1457 = vmatpush1.bf16.msra.mxu0 0
    %1458 = vmatprep.subr.bf16.mxu0 0
    %1459 = vmatpush1.bf16.msra.mxu0 0
    %1460 = vmatprep.subr.bf16.mxu0 0
    %1461 = vmatpush1.bf16.msra.mxu0 0
    %1462 = vmatprep.subr.bf16.mxu0 0
    %1463 = vmatpush1.bf16.msra.mxu0 0
    %1464 = vmatprep.subr.bf16.mxu0 0
    %1465 = vmatpush1.bf16.msra.mxu0 0
    %1466 = vmatprep.subr.bf16.mxu0 0
    %1467 = vmatpush1.bf16.msra.mxu0 0
    %1468 = vmatprep.subr.bf16.mxu0 0
    %1469 = vmatpush1.bf16.msra.mxu0 0
    %1470 = vmatprep.subr.bf16.mxu0 0
    %1471 = vmatpush1.bf16.msra.mxu0 0
    %1472 = vmatprep.subr.bf16.mxu0 0
    %1473 = vmatpush1.bf16.msra.mxu0 0
    %1474 = vmatprep.mubr.bf16.mxu0 0
    %1475 = vmatmul.mubr.bf16.gmra.mrb[0].mxu0 %v1440
    %v1476 = vpop.f32.mrb[0].mxu0
    %v1477 = vadd.f32 %v1018, %v1476
    %v1478 = vpop.f32.mrb[0].mxu0
    %v1479 = vpop.f32.mrb[0].mxu0
    %v1480 = vpop.f32.mrb[0].mxu0
    %1481 = vdwg.mxu0
    %v1482 = vmax.f32 %v1477, 0.0
    %v1483 = vand.u32 2147483647, %v1477
    %v1484 = vsub.f32 0.0, %v1483
    %v1485 = vmul.f32 %v1484, 1.442695
    %v1486 = vpow.pop %v1485
    %v1487 = vadd.f32 %v1486, 1.0
    %v1488 = vlog2.pop %v1487
    %v1489 = vmul.f32 %v1488, 0.6931472
    %v1490 = vadd.f32 %v1482, %v1489
    %v1491 = vsub.f32 %v1490, 0.6931472
    %v1492 = vld [vmem:[%s13] sm:$0x1]
    %v1493 = vpack.c.bf16 %v1491, %v1491
    %v1495 = vsel %vm431, %v1492, 0
    %v1498 = vsel %vm435, %v1493, 0
    %1500 = vmatprep.subr.bf16.mxu0 0
    %1501 = vmatpush1.bf16.msra.mxu0 %v1498
    %1502 = vmatprep.subr.bf16.mxu0 0
    %1503 = vmatpush1.bf16.msra.mxu0 0
    %1504 = vmatprep.subr.bf16.mxu0 0
    %1505 = vmatpush1.bf16.msra.mxu0 0
    %1506 = vmatprep.subr.bf16.mxu0 0
    %1507 = vmatpush1.bf16.msra.mxu0 0
    %1508 = vmatprep.subr.bf16.mxu0 0
    %1509 = vmatpush1.bf16.msra.mxu0 0
    %1510 = vmatprep.subr.bf16.mxu0 0
    %1511 = vmatpush1.bf16.msra.mxu0 0
    %1512 = vmatprep.subr.bf16.mxu0 0
    %1513 = vmatpush1.bf16.msra.mxu0 0
    %1514 = vmatprep.subr.bf16.mxu0 0
    %1515 = vmatpush1.bf16.msra.mxu0 0
    %1516 = vmatprep.subr.bf16.mxu0 0
    %1517 = vmatpush1.bf16.msra.mxu0 0
    %1518 = vmatprep.subr.bf16.mxu0 0
    %1519 = vmatpush1.bf16.msra.mxu0 0
    %1520 = vmatprep.subr.bf16.mxu0 0
    %1521 = vmatpush1.bf16.msra.mxu0 0
    %1522 = vmatprep.subr.bf16.mxu0 0
    %1523 = vmatpush1.bf16.msra.mxu0 0
    %1524 = vmatprep.subr.bf16.mxu0 0
    %1525 = vmatpush1.bf16.msra.mxu0 0
    %1526 = vmatprep.subr.bf16.mxu0 0
    %1527 = vmatpush1.bf16.msra.mxu0 0
    %1528 = vmatprep.subr.bf16.mxu0 0
    %1529 = vmatpush1.bf16.msra.mxu0 0
    %1530 = vmatprep.subr.bf16.mxu0 0
    %1531 = vmatpush1.bf16.msra.mxu0 0
    %1532 = vmatprep.mubr.bf16.mxu0 0
    %1533 = vmatmul.mubr.bf16.gmra.mrb[0].mxu0 %v1495
    %v1534 = vpop.f32.mrb[0].mxu0
    %v1535 = vadd.f32 0.0, %v1534
    %v1536 = vpop.f32.mrb[0].mxu0
    %v1537 = vpop.f32.mrb[0].mxu0
    %v1538 = vpop.f32.mrb[0].mxu0
    %1539 = vdwg.mxu0
    %vm1540 = vcmask 122880
    %1541 = vst.msk [vmem:[#allocation2] sm:$0x1] %vm1540, %v1535
    // Predicated region
    $region58: #{tpu_custom_call.1} parent=1 // pred_check
      _
    $region59: #{tpu_custom_call.1} parent=1 // pred_check_branch
      %1543 = sbr.rel (0) target = $region61
    $region60: #{tpu_custom_call.1} parent=1 // pred_region
      %s1545 = ssub.s32 16, 16
      %1546 = vsyncadd [#allocation3], %s1545
      %s1548 = sshll.u32 [#allocation2], 4
      %s1549 = int_to_ptr.vmem [resolvable:$true] %s1548
      %1551 = dma.vmem_to_hbm [thread:$0]  %s1549, 16, %s14, [#allocation3]
    $region61: #{tpu_custom_call.1} parent=1 // pred_fallthru
      _
    // Predicated region
    $region62: #{tpu_custom_call.1} parent=1 // pred_check
      _
    $region63: #{tpu_custom_call.1} parent=1 // pred_check_branch
      %1553 = sbr.rel (0) target = $region65
    $region64: #{tpu_custom_call.1} parent=1 // pred_region
      %1554 = dma.done [#allocation3], 16
    $region65: #{tpu_custom_call.1} parent=1 // pred_fallthru
      _
    %1555 = vsyncpa [#allocation3], 1

</llo_original>
